<compile_context>
chip_gen: v5e
topology: v5e:2x2
jax: 0.10.0
libtpu: 0.0.40
codegen_flags: <defaults>
</compile_context>

<pallas_src>
import functools

import jax
import jax.numpy as jnp
from jax.experimental import pallas as pl
from jax.experimental.pallas import tpu as pltpu

LANE = 128
SUBLANE = 8


def _round_up(n, m):
    return ((n + m - 1) // m) * m


# ----------------------------------------------------------------------------
# Fused multi-layer GINE kernel.  grid = (n_layers,); the output block acts as
# the node-feature carry (same block index every step -> stays in VMEM).
# ----------------------------------------------------------------------------
def gine_fused_kernel(
    eps_ref,                       # SMEM [L]           learnable eps per layer
    x_ref,                         # VMEM [Np, D]  f32  initial node features
    pe_ref,                        # VMEM [Np, D]  bf16 positional encodings
    src_ref,                       # VMEM [Ep, Np] bf16 one-hot of edge sources
    tgt_ref,                       # VMEM [Np, Ep] bf16 one-hot^T of edge targets
    eoh_ref,                       # VMEM [Ep, T]  bf16 one-hot of edge types
    emb_ref,                       # VMEM [T, D]   bf16 edge-type embedding
    wp1_ref, bp1_ref, wp2_ref, bp2_ref,   # pe_embedding MLP (PE -> D)
    w1_ref, b1_ref, w2_ref, b2_ref,       # output MLP (D -> D)
    out_ref,                       # VMEM [Np, D]  f32  node-feature carry
):
    f32, bf16 = jnp.float32, jnp.bfloat16
    l = pl.program_id(0)

    # Layer 0: initialize the carry with the input node features.
    @pl.when(l == 0)
    def _():
        out_ref[...] = x_ref[...]

    x = out_ref[...]                                   # [Np, D] f32

    # pe_embedding(PE): Linear -> ReLU -> Linear (bf16 matmul, f32 accumulate)
    pe_h = jnp.maximum(
        jnp.dot(pe_ref[...], wp1_ref[...], preferred_element_type=f32)
        + bp1_ref[...], 0.0)
    pe_o = jnp.dot(pe_h.astype(bf16), wp2_ref[...],
                   preferred_element_type=f32) + bp2_ref[...]

    # PE.size(0) == N (!= E)  =>  X_n = X_n + pe_embedding(PE)
    xn = x + pe_o                                      # [Np, D] f32

    # X_e = Embedding(edge_attr)  (exact one-hot gather on the MXU, K = T_PAD = 8)
    xe = jnp.dot(eoh_ref[...], emb_ref[...], preferred_element_type=f32)

    # message: X_j = X_n[src];  m = relu(X_j + X_e)
    xj = jnp.dot(src_ref[...], xn.astype(bf16), preferred_element_type=f32)
    m = jnp.maximum(xj + xe, 0.0)

    # aggregate (add): S[i] = sum_{e : tgt(e)==i} m[e]  (scatter-add as matmul)
    s = jnp.dot(tgt_ref[...], m.astype(bf16), preferred_element_type=f32)

    # Z = (1 + eps) * X_n + S    (eps read from the scalar / SMEM path)
    z = (1.0 + eps_ref[l]) * xn + s

    # output MLP: Linear -> ReLU -> Linear
    h1 = jnp.maximum(
        jnp.dot(z.astype(bf16), w1_ref[...], preferred_element_type=f32)
        + b1_ref[...], 0.0)
    out_ref[...] = (
        jnp.dot(h1.astype(bf16), w2_ref[...], preferred_element_type=f32)
        + b2_ref[...])


# ----------------------------------------------------------------------------
# Host-side padding / wrapping
# ----------------------------------------------------------------------------
def build_padded_graph(x, pe, edge_index, edge_attr, d_pad, t_pad):
    """Zero-pad node/edge operands to 128-aligned, lane-dense shapes."""
    n, e = x.shape[0], edge_index.shape[1]
    n_pad, e_pad = _round_up(n, LANE), _round_up(e, LANE)

    x_p = jnp.zeros((n_pad, d_pad), jnp.float32).at[:n, :x.shape[1]].set(x)
    pe_p = (jnp.zeros((n_pad, d_pad), jnp.float32)
            .at[:n, :pe.shape[1]].set(pe).astype(jnp.bfloat16))

    def pad_idx(ids):   # fill with -1 -> all-zero one-hot rows (no-op edges)
        return jnp.concatenate(
            [ids.astype(jnp.int32), jnp.full((e_pad - e,), -1, jnp.int32)])

    src_oh = jax.nn.one_hot(pad_idx(edge_index[0]), n_pad, dtype=jnp.bfloat16)
    tgt_oh = jax.nn.one_hot(pad_idx(edge_index[1]), n_pad, dtype=jnp.bfloat16).T
    edge_oh = jax.nn.one_hot(pad_idx(edge_attr), t_pad, dtype=jnp.bfloat16)
    return x_p, pe_p, src_oh, tgt_oh, edge_oh


def _vmem_budget_bytes(n_pad, e_pad, d_pad, h_pad, t_pad):
    """Resident VMEM estimate for the fused kernel (single-buffered invariants
    + double-buffered per-layer weights + output carry), with headroom."""
    bf2, f4 = 2, 4
    invariants = (n_pad * d_pad * f4            # x (f32)
                  + n_pad * d_pad * bf2         # pe
                  + e_pad * n_pad * bf2         # src_oh
                  + n_pad * e_pad * bf2         # tgt_oh
                  + e_pad * t_pad * bf2)        # edge one-hot
    per_layer = (t_pad * d_pad * bf2            # emb
                 + 2 * d_pad * h_pad * bf2      # wp1, w1
                 + 2 * h_pad * d_pad * bf2      # wp2, w2
                 + 2 * SUBLANE * h_pad * f4     # bp1, b1 (rows pad to 8)
                 + 2 * SUBLANE * d_pad * f4)    # bp2, b2
    out_carry = 2 * n_pad * d_pad * f4          # output block (default buffering)
    est = invariants + 2 * per_layer + out_carry
    # Headroom; keep >= default scoped limit and <= v7x physical VMEM.
    return int(min(max(1.5 * est + (2 << 20), 32 << 20), 64 << 20))


@functools.partial(jax.jit, static_argnames=("d_out",))
def gine_forward_pallas(stacked, x, pe, edge_index, edge_attr, d_out):
    """Full GINE forward (bn=False, residual=False) in one pallas_call."""
    n_layers, t_pad, d_pad = stacked["emb"].shape
    h_pad = stacked["w1"].shape[2]
    n = x.shape[0]

    x_p, pe_p, src_oh, tgt_oh, edge_oh = build_padded_graph(
        x, pe, edge_index, edge_attr, d_pad, t_pad)
    n_pad, e_pad = x_p.shape[0], src_oh.shape[0]

    # Graph operands keep a constant block index over the layer axis: they are
    # DMA'd into VMEM once and SINGLE-buffered (double-buffering an invariant
    # block hides nothing and doubles its footprint).  Per-layer weights keep
    # the default double-buffering so their DMA overlaps the previous layer.
    const2 = lambda shape: pl.BlockSpec(
        shape, lambda l: (0, 0), pipeline_mode=pl.Buffered(1))
    per_layer = lambda r, c: pl.BlockSpec((None, r, c), lambda l: (l, 0, 0))

    in_specs = [
        pl.BlockSpec(memory_space=pltpu.MemorySpace.SMEM),   # eps [L]
        const2((n_pad, d_pad)),                              # x
        const2((n_pad, d_pad)),                              # pe
        const2((e_pad, n_pad)),                              # src_oh
        const2((n_pad, e_pad)),                              # tgt_oh
        const2((e_pad, t_pad)),                              # edge_oh  [Ep, 8]
        per_layer(t_pad, d_pad),                             # emb      [8, 128]
        per_layer(d_pad, h_pad), per_layer(1, h_pad),        # wp1, bp1
        per_layer(h_pad, d_pad), per_layer(1, d_pad),        # wp2, bp2
        per_layer(d_pad, h_pad), per_layer(1, h_pad),        # w1, b1
        per_layer(h_pad, d_pad), per_layer(1, d_pad),        # w2, b2
    ]
    out_spec = pl.BlockSpec((n_pad, d_pad), lambda l: (0, 0))

    # Advisory cost estimate so XLA schedules surrounding ops sensibly.
    flops = 2 * n_layers * (4 * n_pad * d_pad * h_pad
                            + e_pad * t_pad * d_pad
                            + 2 * e_pad * n_pad * d_pad)
    operands = (x_p, pe_p, src_oh, tgt_oh, edge_oh) + tuple(
        stacked[k] for k in ("emb", "wp1", "bp1", "wp2", "bp2",
                             "w1", "b1", "w2", "b2", "eps"))
    bytes_accessed = sum(a.size * a.dtype.itemsize for a in operands) \
        + n_pad * d_pad * 4

    out_pad = pl.pallas_call(
        gine_fused_kernel,
        out_shape=jax.ShapeDtypeStruct((n_pad, d_pad), jnp.float32),
        grid=(n_layers,),
        in_specs=in_specs,
        out_specs=out_spec,
        compiler_params=pltpu.CompilerParams(
            dimension_semantics=("arbitrary",),        # layers are sequential
            vmem_limit_bytes=_vmem_budget_bytes(n_pad, e_pad, d_pad,
                                                h_pad, t_pad)),
        cost_estimate=pl.CostEstimate(
            flops=int(flops), transcendentals=0,
            bytes_accessed=int(bytes_accessed)),
    )(stacked["eps"], x_p, pe_p, src_oh, tgt_oh, edge_oh,
      stacked["emb"], stacked["wp1"], stacked["bp1"], stacked["wp2"],
      stacked["bp2"], stacked["w1"], stacked["b1"], stacked["w2"],
      stacked["b2"])

    return out_pad[:n, :d_out]


# ----------------------------------------------------------------------------
# Parameter construction (deterministic, in-script)
# create_mlp is fixed to Linear(in, MLP_HIDDEN) -> ReLU -> Linear(MLP_HIDDEN, out)
# ----------------------------------------------------------------------------
def init_layer_params(key, n_edge_types, in_dims, out_dims, mlp_hidden, pe_dim):
    ks = jax.random.split(key, 9)
    scale = 0.1
    f32 = jnp.float32
    return {
        "emb": scale * jax.random.normal(ks[0], (n_edge_types + 1, in_dims), f32),
        "wp1": scale * jax.random.normal(ks[1], (pe_dim, mlp_hidden), f32),
        "bp1": scale * jax.random.normal(ks[2], (1, mlp_hidden), f32),
        "wp2": scale * jax.random.normal(ks[3], (mlp_hidden, in_dims), f32),
        "bp2": scale * jax.random.normal(ks[4], (1, in_dims), f32),
        "w1": scale * jax.random.normal(ks[5], (in_dims, mlp_hidden), f32),
        "b1": scale * jax.random.normal(ks[6], (1, mlp_hidden), f32),
        "w2": scale * jax.random.normal(ks[7], (mlp_hidden, out_dims), f32),
        "b2": jnp.zeros((1, out_dims), f32),
        "eps": scale * jax.random.normal(ks[8], (1,), f32),
    }


def stack_and_pad_params(layer_params, d_pad, h_pad, t_pad):
    """Zero-pad every layer's params to uniform MXU-aligned shapes and stack."""
    def pad2(a, r, c):
        return jnp.pad(a, ((0, r - a.shape[0]), (0, c - a.shape[1])))

    def stk(name, r, c, dtype):
        return jnp.stack([pad2(p[name], r, c) for p in layer_params]).astype(dtype)

    bf16, f32 = jnp.bfloat16, jnp.float32
    return {
        "emb": stk("emb", t_pad, d_pad, bf16),
        "wp1": stk("wp1", d_pad, h_pad, bf16),
        "bp1": stk("bp1", 1, h_pad, f32),
        "wp2": stk("wp2", h_pad, d_pad, bf16),
        "bp2": stk("bp2", 1, d_pad, f32),
        "w1": stk("w1", d_pad, h_pad, bf16),
        "b1": stk("b1", 1, h_pad, f32),
        "w2": stk("w2", h_pad, d_pad, bf16),
        "b2": stk("b2", 1, d_pad, f32),
        "eps": jnp.stack([p["eps"][0] for p in layer_params]).astype(f32),
    }


# ----------------------------------------------------------------------------
# References
# ----------------------------------------------------------------------------
def gine_forward_ref_f32(layer_params, x_n, edge_index, edge_attr, pe):
    """Pure-f32 reference with the original module's semantics."""
    for p in layer_params:
        pe_o = jnp.maximum(pe @ p["wp1"] + p["bp1"], 0.0) @ p["wp2"] + p["bp2"]
        xn = x_n + pe_o
        xe = p["emb"][edge_attr]
        xj = xn[edge_index[0]]
        m = jnp.maximum(xj + xe, 0.0)
        s = jnp.zeros_like(xn).at[edge_index[1]].add(m)
        z = (1.0 + p["eps"][0]) * xn + s
        x_n = jnp.maximum(z @ p["w1"] + p["b1"], 0.0) @ p["w2"] + p["b2"]
    return x_n


def gine_forward_ref_padded(stacked, x_p, pe_p, src_oh, tgt_oh, edge_oh):
    """Reference mirroring the kernel's precision (bf16 matmul, f32 accumulate)."""
    bf16, f32 = jnp.bfloat16, jnp.float32
    dot = lambda a, b: jnp.dot(a.astype(bf16), b.astype(bf16),
                               preferred_element_type=f32)
    x = x_p
    for l in range(stacked["w1"].shape[0]):
        pe_h = jnp.maximum(dot(pe_p, stacked["wp1"][l]) + stacked["bp1"][l], 0.0)
        pe_o = dot(pe_h, stacked["wp2"][l]) + stacked["bp2"][l]
        xn = x + pe_o
        xe = dot(edge_oh, stacked["emb"][l])
        m = jnp.maximum(dot(src_oh, xn) + xe, 0.0)
        s = dot(tgt_oh, m)
        z = (1.0 + stacked["eps"][l]) * xn + s
        h1 = jnp.maximum(dot(z, stacked["w1"][l]) + stacked["b1"][l], 0.0)
        x = dot(h1, stacked["w2"][l]) + stacked["b2"][l]
    return x


# ----------------------------------------------------------------------------
if __name__ == "__main__":
    key = jax.random.PRNGKey(0)

    # Small shapes consistent with the module.
    N_NODES = 16
    N_EDGES = 24          # != N_NODES so the node-level PE branch is taken
    N_EDGE_TYPES = 5
    IN_DIMS = 16
    HIDDEN_DIMS = 32
    OUT_DIMS = 8
    MLP_HIDDEN = 32
    PE_DIM = 37
    N_LAYERS = 2

    k_x, k_pe, k_ei, k_ea, k_p0, k_p1 = jax.random.split(key, 6)
    x_n = jax.random.normal(k_x, (N_NODES, IN_DIMS), jnp.float32)
    pe = jax.random.normal(k_pe, (N_NODES, PE_DIM), jnp.float32)
    edge_index = jax.random.randint(k_ei, (2, N_EDGES), 0, N_NODES, jnp.int32)
    edge_attr = jax.random.randint(k_ea, (N_EDGES,), 0, N_EDGE_TYPES + 1, jnp.int32)

    # n_layers - 1 layers (in -> hidden), then final layer (hidden -> out).
    layer_params = [
        init_layer_params(k_p0, N_EDGE_TYPES, IN_DIMS, HIDDEN_DIMS, MLP_HIDDEN, PE_DIM),
        init_layer_params(k_p1, N_EDGE_TYPES, HIDDEN_DIMS, OUT_DIMS, MLP_HIDDEN, PE_DIM),
    ]
    assert len(layer_params) == N_LAYERS

    # Feature dims padded to 128 lanes (lane-dense matmuls, uniform stacked
    # weights).  Edge-type dim padded only to the next sublane multiple (8):
    # a block dim equal to the full array dim is legal, and this avoids ~95%
    # zero FLOPs / VMEM on the edge-embedding path.
    D_PAD = _round_up(max(IN_DIMS, HIDDEN_DIMS, OUT_DIMS, PE_DIM), LANE)
    H_PAD = _round_up(MLP_HIDDEN, LANE)
    T_PAD = _round_up(N_EDGE_TYPES + 1, SUBLANE)
    stacked = stack_and_pad_params(layer_params, D_PAD, H_PAD, T_PAD)

    out = gine_forward_pallas(stacked, x_n, pe, edge_index, edge_attr, OUT_DIMS)
    out = jax.block_until_ready(out)
    assert out.shape == (N_NODES, OUT_DIMS)

    # Tight check vs a reference that mirrors the kernel's precision policy.
    x_p, pe_p, src_oh, tgt_oh, edge_oh = build_padded_graph(
        x_n, pe, edge_index, edge_attr, D_PAD, T_PAD)
    ref_p = gine_forward_ref_padded(
        stacked, x_p, pe_p, src_oh, tgt_oh, edge_oh)[:N_NODES, :OUT_DIMS]
    assert jnp.allclose(out, ref_p, atol=1e-3, rtol=1e-3), \
        "mismatch vs precision-matched reference"

    # Loose sanity check vs the full-f32 original-module semantics
    # (difference = deliberate bf16 MXU-input rounding).
    ref_f32 = gine_forward_ref_f32(layer_params, x_n, edge_index, edge_attr, pe)
    rel_err = jnp.linalg.norm(out - ref_f32) / jnp.linalg.norm(ref_f32)
    assert rel_err < 5e-2, f"bf16 deviation too large: {rel_err}"

    print("KERNEL_OK")
</pallas_src>

<mosaic_0001>
module attributes {stable_mosaic.version = 11 : i64} {
  func.func @gine_fused_kernel(%arg0: i32, %arg1: memref<2xf32, #tpu.memory_space<smem>>, %arg2: memref<128x128xf32, #tpu.memory_space<vmem>>, %arg3: memref<128x128xbf16, #tpu.memory_space<vmem>>, %arg4: memref<128x128xbf16, #tpu.memory_space<vmem>>, %arg5: memref<128x128xbf16, #tpu.memory_space<vmem>>, %arg6: memref<128x8xbf16, #tpu.memory_space<vmem>>, %arg7: memref<1x8x128xbf16, #tpu.memory_space<vmem>>, %arg8: memref<1x128x128xbf16, #tpu.memory_space<vmem>>, %arg9: memref<1x1x128xf32, #tpu.memory_space<vmem>>, %arg10: memref<1x128x128xbf16, #tpu.memory_space<vmem>>, %arg11: memref<1x1x128xf32, #tpu.memory_space<vmem>>, %arg12: memref<1x128x128xbf16, #tpu.memory_space<vmem>>, %arg13: memref<1x1x128xf32, #tpu.memory_space<vmem>>, %arg14: memref<1x128x128xbf16, #tpu.memory_space<vmem>>, %arg15: memref<1x1x128xf32, #tpu.memory_space<vmem>>, %arg16: memref<128x128xf32, #tpu.memory_space<vmem>>) attributes {dimension_semantics = [#tpu.dimension_semantics<arbitrary>], iteration_bounds = array<i64: 2>, scalar_prefetch = 0 : i64, scratch_operands = 0 : i64, tpu.core_type = #tpu.core_type<tc>, window_params = [{transform_indices = @transform_0, window_bounds = array<i64: 2>}, {pipeline_mode = #tpu.pipeline_mode<synchronous>, transform_indices = @transform_1, window_bounds = array<i64: 128, 128>}, {pipeline_mode = #tpu.pipeline_mode<synchronous>, transform_indices = @transform_2, window_bounds = array<i64: 128, 128>}, {pipeline_mode = #tpu.pipeline_mode<synchronous>, transform_indices = @transform_3, window_bounds = array<i64: 128, 128>}, {pipeline_mode = #tpu.pipeline_mode<synchronous>, transform_indices = @transform_4, window_bounds = array<i64: 128, 128>}, {pipeline_mode = #tpu.pipeline_mode<synchronous>, transform_indices = @transform_5, window_bounds = array<i64: 128, 8>}, {transform_indices = @transform_6, window_bounds = array<i64: 1, 8, 128>}, {transform_indices = @transform_7, window_bounds = array<i64: 1, 128, 128>}, {transform_indices = @transform_8, window_bounds = array<i64: 1, 1, 128>}, {transform_indices = @transform_9, window_bounds = array<i64: 1, 128, 128>}, {transform_indices = @transform_10, window_bounds = array<i64: 1, 1, 128>}, {transform_indices = @transform_11, window_bounds = array<i64: 1, 128, 128>}, {transform_indices = @transform_12, window_bounds = array<i64: 1, 1, 128>}, {transform_indices = @transform_13, window_bounds = array<i64: 1, 128, 128>}, {transform_indices = @transform_14, window_bounds = array<i64: 1, 1, 128>}, {pipeline_mode = #tpu.pipeline_mode<synchronous>, transform_indices = @transform_15, window_bounds = array<i64: 128, 128>}]} {
    %c0_i32 = arith.constant 0 : i32
    %0 = arith.cmpi eq, %arg0, %c0_i32 : i32
    %1 = arith.extui %0 : i1 to i32
    %c0_i32_0 = arith.constant 0 : i32
    %2 = arith.cmpi ne, %1, %c0_i32_0 : i32
    scf.if %2 {
      %c0_49 = arith.constant 0 : index
      %c0_50 = arith.constant 0 : index
      %61 = vector.load %arg2[%c0_49, %c0_50] : memref<128x128xf32, #tpu.memory_space<vmem>>, vector<128x128xf32>
      %c0_51 = arith.constant 0 : index
      %c0_52 = arith.constant 0 : index
      %62 = vector.load %arg16[%c0_51, %c0_52] : memref<128x128xf32, #tpu.memory_space<vmem>>, vector<128x128xf32>
      tpu.vector_store %arg16[%c0_51, %c0_52], %61 {strides = array<i32>} : memref<128x128xf32, #tpu.memory_space<vmem>>, vector<128x128xf32>,
    } else {
    }
    %c0 = arith.constant 0 : index
    %c0_1 = arith.constant 0 : index
    %3 = vector.load %arg16[%c0, %c0_1] : memref<128x128xf32, #tpu.memory_space<vmem>>, vector<128x128xf32>
    %c0_2 = arith.constant 0 : index
    %c0_3 = arith.constant 0 : index
    %4 = vector.load %arg3[%c0_2, %c0_3] : memref<128x128xbf16, #tpu.memory_space<vmem>>, vector<128x128xbf16>
    %c0_4 = arith.constant 0 : index
    %c0_5 = arith.constant 0 : index
    %c0_6 = arith.constant 0 : index
    %5 = vector.load %arg8[%c0_4, %c0_5, %c0_6] : memref<1x128x128xbf16, #tpu.memory_space<vmem>>, vector<1x128x128xbf16>
    %6 = vector.shape_cast %5 : vector<1x128x128xbf16> to vector<128x128xbf16>
    %cst = arith.constant dense<0.000000e+00> : vector<128x128xf32>
    %7 = tpu.matmul %4, %6, %cst {dimension_numbers = #tpu.dot_dimension_numbers<[1], [0], [0], [1], [0, 0, 1, 1], [], []>} : vector<128x128xbf16>, vector<128x128xbf16>, vector<128x128xf32> -> vector<128x128xf32>
    %c0_7 = arith.constant 0 : index
    %c0_8 = arith.constant 0 : index
    %c0_9 = arith.constant 0 : index
    %8 = vector.load %arg9[%c0_7, %c0_8, %c0_9] : memref<1x1x128xf32, #tpu.memory_space<vmem>>, vector<1x1x128xf32>
    %9 = vector.shape_cast %8 : vector<1x1x128xf32> to vector<1x128xf32>
    %10 = vector.broadcast %9 : vector<1x128xf32> to vector<128x128xf32>
    %11 = arith.addf %7, %10 : vector<128x128xf32>
    %cst_10 = arith.constant 0.000000e+00 : f32
    %12 = vector.broadcast %cst_10 : f32 to vector<128x128xf32>
    %13 = arith.maximumf %11, %12 : vector<128x128xf32>
    %14 = arith.truncf %13 : vector<128x128xf32> to vector<128x128xbf16>
    %c0_11 = arith.constant 0 : index
    %c0_12 = arith.constant 0 : index
    %c0_13 = arith.constant 0 : index
    %15 = vector.load %arg10[%c0_11, %c0_12, %c0_13] : memref<1x128x128xbf16, #tpu.memory_space<vmem>>, vector<1x128x128xbf16>
    %16 = vector.shape_cast %15 : vector<1x128x128xbf16> to vector<128x128xbf16>
    %cst_14 = arith.constant dense<0.000000e+00> : vector<128x128xf32>
    %17 = tpu.matmul %14, %16, %cst_14 {dimension_numbers = #tpu.dot_dimension_numbers<[1], [0], [0], [1], [0, 0, 1, 1], [], []>} : vector<128x128xbf16>, vector<128x128xbf16>, vector<128x128xf32> -> vector<128x128xf32>
    %c0_15 = arith.constant 0 : index
    %c0_16 = arith.constant 0 : index
    %c0_17 = arith.constant 0 : index
    %18 = vector.load %arg11[%c0_15, %c0_16, %c0_17] : memref<1x1x128xf32, #tpu.memory_space<vmem>>, vector<1x1x128xf32>
    %19 = vector.shape_cast %18 : vector<1x1x128xf32> to vector<1x128xf32>
    %20 = vector.broadcast %19 : vector<1x128xf32> to vector<128x128xf32>
    %21 = arith.addf %17, %20 : vector<128x128xf32>
    %22 = arith.addf %3, %21 : vector<128x128xf32>
    %c0_18 = arith.constant 0 : index
    %c0_19 = arith.constant 0 : index
    %23 = vector.load %arg6[%c0_18, %c0_19] : memref<128x8xbf16, #tpu.memory_space<vmem>>, vector<128x8xbf16>
    %c0_20 = arith.constant 0 : index
    %c0_21 = arith.constant 0 : index
    %c0_22 = arith.constant 0 : index
    %24 = vector.load %arg7[%c0_20, %c0_21, %c0_22] : memref<1x8x128xbf16, #tpu.memory_space<vmem>>, vector<1x8x128xbf16>
    %25 = vector.shape_cast %24 : vector<1x8x128xbf16> to vector<8x128xbf16>
    %cst_23 = arith.constant dense<0.000000e+00> : vector<128x128xf32>
    %26 = tpu.matmul %23, %25, %cst_23 {dimension_numbers = #tpu.dot_dimension_numbers<[1], [0], [0], [1], [0, 0, 1, 1], [], []>} : vector<128x8xbf16>, vector<8x128xbf16>, vector<128x128xf32> -> vector<128x128xf32>
    %c0_24 = arith.constant 0 : index
    %c0_25 = arith.constant 0 : index
    %27 = vector.load %arg4[%c0_24, %c0_25] : memref<128x128xbf16, #tpu.memory_space<vmem>>, vector<128x128xbf16>
    %28 = arith.truncf %22 : vector<128x128xf32> to vector<128x128xbf16>
    %cst_26 = arith.constant dense<0.000000e+00> : vector<128x128xf32>
    %29 = tpu.matmul %27, %28, %cst_26 {dimension_numbers = #tpu.dot_dimension_numbers<[1], [0], [0], [1], [0, 0, 1, 1], [], []>} : vector<128x128xbf16>, vector<128x128xbf16>, vector<128x128xf32> -> vector<128x128xf32>
    %30 = arith.addf %29, %26 : vector<128x128xf32>
    %cst_27 = arith.constant 0.000000e+00 : f32
    %31 = vector.broadcast %cst_27 : f32 to vector<128x128xf32>
    %32 = arith.maximumf %30, %31 : vector<128x128xf32>
    %c0_28 = arith.constant 0 : index
    %c0_29 = arith.constant 0 : index
    %33 = vector.load %arg5[%c0_28, %c0_29] : memref<128x128xbf16, #tpu.memory_space<vmem>>, vector<128x128xbf16>
    %34 = arith.truncf %32 : vector<128x128xf32> to vector<128x128xbf16>
    %cst_30 = arith.constant dense<0.000000e+00> : vector<128x128xf32>
    %35 = tpu.matmul %33, %34, %cst_30 {dimension_numbers = #tpu.dot_dimension_numbers<[1], [0], [0], [1], [0, 0, 1, 1], [], []>} : vector<128x128xbf16>, vector<128x128xbf16>, vector<128x128xf32> -> vector<128x128xf32>
    %36 = arith.index_cast %arg0 : i32 to index
    %37 = memref.load %arg1[%36] : memref<2xf32, #tpu.memory_space<smem>>
    %cst_31 = arith.constant 1.000000e+00 : f32
    %38 = arith.addf %cst_31, %37 : f32
    %39 = vector.broadcast %38 : f32 to vector<128x128xf32>
    %40 = arith.mulf %39, %22 : vector<128x128xf32>
    %41 = arith.addf %40, %35 : vector<128x128xf32>
    %42 = arith.truncf %41 : vector<128x128xf32> to vector<128x128xbf16>
    %c0_32 = arith.constant 0 : index
    %c0_33 = arith.constant 0 : index
    %c0_34 = arith.constant 0 : index
    %43 = vector.load %arg12[%c0_32, %c0_33, %c0_34] : memref<1x128x128xbf16, #tpu.memory_space<vmem>>, vector<1x128x128xbf16>
    %44 = vector.shape_cast %43 : vector<1x128x128xbf16> to vector<128x128xbf16>
    %cst_35 = arith.constant dense<0.000000e+00> : vector<128x128xf32>
    %45 = tpu.matmul %42, %44, %cst_35 {dimension_numbers = #tpu.dot_dimension_numbers<[1], [0], [0], [1], [0, 0, 1, 1], [], []>} : vector<128x128xbf16>, vector<128x128xbf16>, vector<128x128xf32> -> vector<128x128xf32>
    %c0_36 = arith.constant 0 : index
    %c0_37 = arith.constant 0 : index
    %c0_38 = arith.constant 0 : index
    %46 = vector.load %arg13[%c0_36, %c0_37, %c0_38] : memref<1x1x128xf32, #tpu.memory_space<vmem>>, vector<1x1x128xf32>
    %47 = vector.shape_cast %46 : vector<1x1x128xf32> to vector<1x128xf32>
    %48 = vector.broadcast %47 : vector<1x128xf32> to vector<128x128xf32>
    %49 = arith.addf %45, %48 : vector<128x128xf32>
    %cst_39 = arith.constant 0.000000e+00 : f32
    %50 = vector.broadcast %cst_39 : f32 to vector<128x128xf32>
    %51 = arith.maximumf %49, %50 : vector<128x128xf32>
    %52 = arith.truncf %51 : vector<128x128xf32> to vector<128x128xbf16>
    %c0_40 = arith.constant 0 : index
    %c0_41 = arith.constant 0 : index
    %c0_42 = arith.constant 0 : index
    %53 = vector.load %arg14[%c0_40, %c0_41, %c0_42] : memref<1x128x128xbf16, #tpu.memory_space<vmem>>, vector<1x128x128xbf16>
    %54 = vector.shape_cast %53 : vector<1x128x128xbf16> to vector<128x128xbf16>
    %cst_43 = arith.constant dense<0.000000e+00> : vector<128x128xf32>
    %55 = tpu.matmul %52, %54, %cst_43 {dimension_numbers = #tpu.dot_dimension_numbers<[1], [0], [0], [1], [0, 0, 1, 1], [], []>} : vector<128x128xbf16>, vector<128x128xbf16>, vector<128x128xf32> -> vector<128x128xf32>
    %c0_44 = arith.constant 0 : index
    %c0_45 = arith.constant 0 : index
    %c0_46 = arith.constant 0 : index
    %56 = vector.load %arg15[%c0_44, %c0_45, %c0_46] : memref<1x1x128xf32, #tpu.memory_space<vmem>>, vector<1x1x128xf32>
    %57 = vector.shape_cast %56 : vector<1x1x128xf32> to vector<1x128xf32>
    %58 = vector.broadcast %57 : vector<1x128xf32> to vector<128x128xf32>
    %59 = arith.addf %55, %58 : vector<128x128xf32>
    %c0_47 = arith.constant 0 : index
    %c0_48 = arith.constant 0 : index
    %60 = vector.load %arg16[%c0_47, %c0_48] : memref<128x128xf32, #tpu.memory_space<vmem>>, vector<128x128xf32>
    tpu.vector_store %arg16[%c0_47, %c0_48], %59 {strides = array<i32>} : memref<128x128xf32, #tpu.memory_space<vmem>>, vector<128x128xf32>,
    return
  }
  func.func @transform_0(%arg0: i32) -> i32 {
    %c0_i32 = arith.constant 0 : i32
    %c0_i32_0 = arith.constant 0 : i32
    return %c0_i32 : i32
  }
  func.func @transform_1(%arg0: i32) -> (i32, i32) {
    %c0_i32 = arith.constant 0 : i32
    %c0_i32_0 = arith.constant 0 : i32
    %c0_i32_1 = arith.constant 0 : i32
    return %c0_i32, %c0_i32_0 : i32, i32
  }
  func.func @transform_2(%arg0: i32) -> (i32, i32) {
    %c0_i32 = arith.constant 0 : i32
    %c0_i32_0 = arith.constant 0 : i32
    %c0_i32_1 = arith.constant 0 : i32
    return %c0_i32, %c0_i32_0 : i32, i32
  }
  func.func @transform_3(%arg0: i32) -> (i32, i32) {
    %c0_i32 = arith.constant 0 : i32
    %c0_i32_0 = arith.constant 0 : i32
    %c0_i32_1 = arith.constant 0 : i32
    return %c0_i32, %c0_i32_0 : i32, i32
  }
  func.func @transform_4(%arg0: i32) -> (i32, i32) {
    %c0_i32 = arith.constant 0 : i32
    %c0_i32_0 = arith.constant 0 : i32
    %c0_i32_1 = arith.constant 0 : i32
    return %c0_i32, %c0_i32_0 : i32, i32
  }
  func.func @transform_5(%arg0: i32) -> (i32, i32) {
    %c0_i32 = arith.constant 0 : i32
    %c0_i32_0 = arith.constant 0 : i32
    %c0_i32_1 = arith.constant 0 : i32
    return %c0_i32, %c0_i32_0 : i32, i32
  }
  func.func @transform_6(%arg0: i32) -> (i32, i32, i32) {
    %c0_i32 = arith.constant 0 : i32
    %c0_i32_0 = arith.constant 0 : i32
    %c0_i32_1 = arith.constant 0 : i32
    return %arg0, %c0_i32, %c0_i32_0 : i32, i32, i32
  }
  func.func @transform_7(%arg0: i32) -> (i32, i32, i32) {
    %c0_i32 = arith.constant 0 : i32
    %c0_i32_0 = arith.constant 0 : i32
    %c0_i32_1 = arith.constant 0 : i32
    return %arg0, %c0_i32, %c0_i32_0 : i32, i32, i32
  }
  func.func @transform_8(%arg0: i32) -> (i32, i32, i32) {
    %c0_i32 = arith.constant 0 : i32
    %c0_i32_0 = arith.constant 0 : i32
    %c0_i32_1 = arith.constant 0 : i32
    return %arg0, %c0_i32, %c0_i32_0 : i32, i32, i32
  }
  func.func @transform_9(%arg0: i32) -> (i32, i32, i32) {
    %c0_i32 = arith.constant 0 : i32
    %c0_i32_0 = arith.constant 0 : i32
    %c0_i32_1 = arith.constant 0 : i32
    return %arg0, %c0_i32, %c0_i32_0 : i32, i32, i32
  }
  func.func @transform_10(%arg0: i32) -> (i32, i32, i32) {
    %c0_i32 = arith.constant 0 : i32
    %c0_i32_0 = arith.constant 0 : i32
    %c0_i32_1 = arith.constant 0 : i32
    return %arg0, %c0_i32, %c0_i32_0 : i32, i32, i32
  }
  func.func @transform_11(%arg0: i32) -> (i32, i32, i32) {
    %c0_i32 = arith.constant 0 : i32
    %c0_i32_0 = arith.constant 0 : i32
    %c0_i32_1 = arith.constant 0 : i32
    return %arg0, %c0_i32, %c0_i32_0 : i32, i32, i32
  }
  func.func @transform_12(%arg0: i32) -> (i32, i32, i32) {
    %c0_i32 = arith.constant 0 : i32
    %c0_i32_0 = arith.constant 0 : i32
    %c0_i32_1 = arith.constant 0 : i32
    return %arg0, %c0_i32, %c0_i32_0 : i32, i32, i32
  }
  func.func @transform_13(%arg0: i32) -> (i32, i32, i32) {
    %c0_i32 = arith.constant 0 : i32
    %c0_i32_0 = arith.constant 0 : i32
    %c0_i32_1 = arith.constant 0 : i32
    return %arg0, %c0_i32, %c0_i32_0 : i32, i32, i32
  }
  func.func @transform_14(%arg0: i32) -> (i32, i32, i32) {
    %c0_i32 = arith.constant 0 : i32
    %c0_i32_0 = arith.constant 0 : i32
    %c0_i32_1 = arith.constant 0 : i32
    return %arg0, %c0_i32, %c0_i32_0 : i32, i32, i32
  }
  func.func @transform_15(%arg0: i32) -> (i32, i32) {
    %c0_i32 = arith.constant 0 : i32
    %c0_i32_0 = arith.constant 0 : i32
    %c0_i32_1 = arith.constant 0 : i32
    return %c0_i32, %c0_i32_0 : i32, i32
  }
}

</mosaic_0001>

<llo_original>
// kernel: gine_forward_pallas.1
$region0: #{gine_forward_pallas.1}
  #allocation0 [shape = 'u32[]', space=smem, size = 0x4, offset = 0x4, fixed_abs, tag = 'smem constant byte address 0x4 - core index']
  #allocation1 [shape = 'u32[72,128]{1,0:T(1,128)}', space=vmem, size = 0x9000, scoped, tag = 'internal scratch']
  %s0 = inlined_call_operand.vmem [shape: f32[2], index: 0, kind: input, shape index: {}]
  %s1 = inlined_call_operand.vmem [shape: f32[128,128], index: 1, kind: input, shape index: {}]
  %s2 = inlined_call_operand.vmem [shape: bf16[128,128], index: 2, kind: input, shape index: {}]
  %s3 = inlined_call_operand.vmem [shape: bf16[128,128], index: 3, kind: input, shape index: {}]
  %s4 = inlined_call_operand.vmem [shape: bf16[128,128], index: 4, kind: input, shape index: {}]
  %s5 = inlined_call_operand.vmem [shape: bf16[128,8], index: 5, kind: input, shape index: {}]
  %s6 = inlined_call_operand.vmem [shape: bf16[2,8,128], index: 6, kind: input, shape index: {}]
  %s7 = inlined_call_operand.vmem [shape: bf16[2,128,128], index: 7, kind: input, shape index: {}]
  %s8 = inlined_call_operand.vmem [shape: f32[2,1,128], index: 8, kind: input, shape index: {}]
  %s9 = inlined_call_operand.vmem [shape: bf16[2,128,128], index: 9, kind: input, shape index: {}]
  %s10 = inlined_call_operand.vmem [shape: f32[2,1,128], index: 10, kind: input, shape index: {}]
  %s11 = inlined_call_operand.vmem [shape: bf16[2,128,128], index: 11, kind: input, shape index: {}]
  %s12 = inlined_call_operand.vmem [shape: f32[2,1,128], index: 12, kind: input, shape index: {}]
  %s13 = inlined_call_operand.hbm [shape: bf16[2,128,128], index: 13, kind: input, shape index: {}]
  %s14 = inlined_call_operand.vmem [shape: f32[2,1,128], index: 14, kind: input, shape index: {}]
  %s15 = inlined_call_operand.vmem [shape: f32[128,128], index: 15, kind: output, shape index: {}]
  %s16 = sld [smem:[#allocation0]]
  $region105: #{gine_forward_pallas.1} parent=0
    _
  %s18 = ssub.s32 1, %s16
  %s19 = scalar_select 0, %s18, %s16
  $region1: #{gine_forward_pallas.1} parent=0
    #allocation2 [shape = 'u8[512]{0}', space=smem, size = 0x200, scoped, tag = 'input window, operand 0, single buffered']
    #allocation3 [shape = 's32[2]{0}', space=sflag, size = 0x8, scoped, tag = 'scoped memory for gine_forward_pallas.1']
    #allocation4 [shape = 's32[2]{0}', space=sflag, size = 0x8, scoped, tag = 'scoped memory for gine_forward_pallas.1']
    #allocation5 [shape = 'u8[65536]{0}', space=vmem, size = 0x10000, scoped, tag = 'input window, operand 13']
    %20 = vsyncpa [#allocation4], 0
    %21 = vsyncpa [#allocation3], 0
    %s22 = scalar_lea.sflag [#allocation3], 1
    %23 = vsyncpa %s22, 0
    loop: start=0, step=1, limit=4
    $region2: #{gine_forward_pallas.1} parent=1 // loop_pre_header
      _
    $region3: #{gine_forward_pallas.1} parent=1 // loop_header
      %s25 = sphi 0, %s29
      %p26 = scmp.ge.s32.totalorder %s25, 4
      %s33 = sphi 0, %s33
      %s35 = sphi 0, %s33
      %s36 = sphi 0, %s35
      %s50 = sphi 0, %s36
      %s54 = sphi 0, %s54
      %s56 = sphi 0, %s54
      %s57 = sphi 0, %s56
      %s71 = sphi 0, %s57
      %s75 = sphi 0, %s75
      %s77 = sphi 0, %s75
      %s78 = sphi 0, %s77
      %s92 = sphi 0, %s78
      %s96 = sphi 0, %s96
      %s98 = sphi 0, %s96
      %s99 = sphi 0, %s98
      %s113 = sphi 0, %s99
      %s117 = sphi 0, %s117
      %s119 = sphi 0, %s117
      %s120 = sphi 0, %s119
      %s134 = sphi 0, %s120
      %s138 = sphi 0, %s138
      %s140 = sphi 0, %s138
      %s141 = sphi 0, %s140
      %s155 = sphi 0, %s141
      %s161 = sphi 0, %s163
      %s164 = sphi 0, %s161
      %s165 = sphi 0, %s164
      %s181 = sphi 0, %s165
      %s187 = sphi 0, %s189
      %s190 = sphi 0, %s187
      %s191 = sphi 0, %s190
      %s207 = sphi 0, %s191
      %s213 = sphi 0, %s215
      %s216 = sphi 0, %s213
      %s217 = sphi 0, %s216
      %s233 = sphi 0, %s217
      %s239 = sphi 0, %s241
      %s242 = sphi 0, %s239
      %s243 = sphi 0, %s242
      %s259 = sphi 0, %s243
      %s265 = sphi 0, %s267
      %s268 = sphi 0, %s265
      %s269 = sphi 0, %s268
      %s285 = sphi 0, %s269
      %s291 = sphi 0, %s293
      %s294 = sphi 0, %s291
      %s295 = sphi 0, %s294
      %s311 = sphi 0, %s295
      %s317 = sphi 0, %s319
      %s320 = sphi 0, %s317
      %s321 = sphi 0, %s320
      %s337 = sphi 0, %s321
      %s343 = sphi 0, %s345
      %s346 = sphi 0, %s343
      %s347 = sphi 0, %s346
      %s363 = sphi 0, %s347
      %s369 = sphi 0, %s371
      %s372 = sphi 0, %s369
      %s373 = sphi 0, %s372
      %s389 = sphi 0, %s373
      %s393 = sphi 0, %s393
      %s395 = sphi 0, %s393
      %s396 = sphi 0, %s395
      %s410 = sphi 0, %s396
    $region4: #{gine_forward_pallas.1} parent=1 // loop_header_branch
      %28 = sbr.rel (%p26) target = $region8
    $region5: #{gine_forward_pallas.1} parent=1 // loop_body
      %s30 = ssub.s32 %s25, 1
      %s31 = ssub.s32 %s25, 2
      %s32 = sadd.s32 %s25, 1
      %s34 = sadd.s32 %s33, 1
      %p37 = scmp.eq.s32.totalorder %s25, 1
      %p38 = scmp.ne.s32.totalorder %s33, %s35
      %p39 = scmp.eq.s32.totalorder %s25, 0
      %p40 = por %p38, %p39
      %p41 = scmp.ne.s32.totalorder %s33, %s35
      %p42 = scmp.eq.s32.totalorder %s30, 1
      %p43 = por %p41, %p42
      %p44 = scmp.ne.s32.totalorder %s35, %s36
      %p45 = scmp.eq.s32.totalorder %s30, 0
      %p46 = por %p44, %p45
      %p47 = scmp.ne.s32.totalorder %s35, %s36
      %p48 = scmp.eq.s32.totalorder %s31, 1
      %p49 = por %p47, %p48
      %p51 = scmp.ne.s32.totalorder %s36, %s50
      %p52 = scmp.eq.s32.totalorder %s31, 0
      %p53 = por %p51, %p52
      %s55 = sadd.s32 %s54, 1
      %p58 = scmp.eq.s32.totalorder %s25, 1
      %p59 = scmp.ne.s32.totalorder %s54, %s56
      %p60 = scmp.eq.s32.totalorder %s25, 0
      %p61 = por %p59, %p60
      %p62 = scmp.ne.s32.totalorder %s54, %s56
      %p63 = scmp.eq.s32.totalorder %s30, 1
      %p64 = por %p62, %p63
      %p65 = scmp.ne.s32.totalorder %s56, %s57
      %p66 = scmp.eq.s32.totalorder %s30, 0
      %p67 = por %p65, %p66
      %p68 = scmp.ne.s32.totalorder %s56, %s57
      %p69 = scmp.eq.s32.totalorder %s31, 1
      %p70 = por %p68, %p69
      %p72 = scmp.ne.s32.totalorder %s57, %s71
      %p73 = scmp.eq.s32.totalorder %s31, 0
      %p74 = por %p72, %p73
      %s76 = sadd.s32 %s75, 1
      %p79 = scmp.eq.s32.totalorder %s25, 1
      %p80 = scmp.ne.s32.totalorder %s75, %s77
      %p81 = scmp.eq.s32.totalorder %s25, 0
      %p82 = por %p80, %p81
      %p83 = scmp.ne.s32.totalorder %s75, %s77
      %p84 = scmp.eq.s32.totalorder %s30, 1
      %p85 = por %p83, %p84
      %p86 = scmp.ne.s32.totalorder %s77, %s78
      %p87 = scmp.eq.s32.totalorder %s30, 0
      %p88 = por %p86, %p87
      %p89 = scmp.ne.s32.totalorder %s77, %s78
      %p90 = scmp.eq.s32.totalorder %s31, 1
      %p91 = por %p89, %p90
      %p93 = scmp.ne.s32.totalorder %s78, %s92
      %p94 = scmp.eq.s32.totalorder %s31, 0
      %p95 = por %p93, %p94
      %s97 = sadd.s32 %s96, 1
      %p100 = scmp.eq.s32.totalorder %s25, 1
      %p101 = scmp.ne.s32.totalorder %s96, %s98
      %p102 = scmp.eq.s32.totalorder %s25, 0
      %p103 = por %p101, %p102
      %p104 = scmp.ne.s32.totalorder %s96, %s98
      %p105 = scmp.eq.s32.totalorder %s30, 1
      %p106 = por %p104, %p105
      %p107 = scmp.ne.s32.totalorder %s98, %s99
      %p108 = scmp.eq.s32.totalorder %s30, 0
      %p109 = por %p107, %p108
      %p110 = scmp.ne.s32.totalorder %s98, %s99
      %p111 = scmp.eq.s32.totalorder %s31, 1
      %p112 = por %p110, %p111
      %p114 = scmp.ne.s32.totalorder %s99, %s113
      %p115 = scmp.eq.s32.totalorder %s31, 0
      %p116 = por %p114, %p115
      %s118 = sadd.s32 %s117, 1
      %p121 = scmp.eq.s32.totalorder %s25, 1
      %p122 = scmp.ne.s32.totalorder %s117, %s119
      %p123 = scmp.eq.s32.totalorder %s25, 0
      %p124 = por %p122, %p123
      %p125 = scmp.ne.s32.totalorder %s117, %s119
      %p126 = scmp.eq.s32.totalorder %s30, 1
      %p127 = por %p125, %p126
      %p128 = scmp.ne.s32.totalorder %s119, %s120
      %p129 = scmp.eq.s32.totalorder %s30, 0
      %p130 = por %p128, %p129
      %p131 = scmp.ne.s32.totalorder %s119, %s120
      %p132 = scmp.eq.s32.totalorder %s31, 1
      %p133 = por %p131, %p132
      %p135 = scmp.ne.s32.totalorder %s120, %s134
      %p136 = scmp.eq.s32.totalorder %s31, 0
      %p137 = por %p135, %p136
      %s139 = sadd.s32 %s138, 1
      %p142 = scmp.eq.s32.totalorder %s25, 1
      %p143 = scmp.ne.s32.totalorder %s138, %s140
      %p144 = scmp.eq.s32.totalorder %s25, 0
      %p145 = por %p143, %p144
      %p146 = scmp.ne.s32.totalorder %s138, %s140
      %p147 = scmp.eq.s32.totalorder %s30, 1
      %p148 = por %p146, %p147
      %p149 = scmp.ne.s32.totalorder %s140, %s141
      %p150 = scmp.eq.s32.totalorder %s30, 0
      %p151 = por %p149, %p150
      %p152 = scmp.ne.s32.totalorder %s140, %s141
      %p153 = scmp.eq.s32.totalorder %s31, 1
      %p154 = por %p152, %p153
      %p156 = scmp.ne.s32.totalorder %s141, %s155
      %p157 = scmp.eq.s32.totalorder %s31, 0
      %p158 = por %p156, %p157
      %s159 = ssub.s32 %s25, %s32
      %p160 = scmp.eq.s32.totalorder %s159, 0
      %s162 = sadd.s32 %s161, 1
      %s163 = scalar_select %p160, %s161, %s162
      %p166 = pneg %p160
      %p167 = scmp.eq.s32.totalorder %s25, 1
      %p168 = por %p166, %p167
      %p169 = scmp.ne.s32.totalorder %s161, %s164
      %p170 = scmp.eq.s32.totalorder %s25, 0
      %p171 = por %p169, %p170
      %p172 = scmp.ne.s32.totalorder %s161, %s164
      %p173 = scmp.eq.s32.totalorder %s30, 1
      %p174 = por %p172, %p173
      %p175 = scmp.ne.s32.totalorder %s164, %s165
      %p176 = scmp.eq.s32.totalorder %s30, 0
      %p177 = por %p175, %p176
      %p178 = scmp.ne.s32.totalorder %s164, %s165
      %p179 = scmp.eq.s32.totalorder %s31, 1
      %p180 = por %p178, %p179
      %p182 = scmp.ne.s32.totalorder %s165, %s181
      %p183 = scmp.eq.s32.totalorder %s31, 0
      %p184 = por %p182, %p183
      %s185 = ssub.s32 %s25, %s32
      %p186 = scmp.eq.s32.totalorder %s185, 0
      %s188 = sadd.s32 %s187, 1
      %s189 = scalar_select %p186, %s187, %s188
      %p192 = pneg %p186
      %p193 = scmp.eq.s32.totalorder %s25, 1
      %p194 = por %p192, %p193
      %p195 = scmp.ne.s32.totalorder %s187, %s190
      %p196 = scmp.eq.s32.totalorder %s25, 0
      %p197 = por %p195, %p196
      %p198 = scmp.ne.s32.totalorder %s187, %s190
      %p199 = scmp.eq.s32.totalorder %s30, 1
      %p200 = por %p198, %p199
      %p201 = scmp.ne.s32.totalorder %s190, %s191
      %p202 = scmp.eq.s32.totalorder %s30, 0
      %p203 = por %p201, %p202
      %p204 = scmp.ne.s32.totalorder %s190, %s191
      %p205 = scmp.eq.s32.totalorder %s31, 1
      %p206 = por %p204, %p205
      %p208 = scmp.ne.s32.totalorder %s191, %s207
      %p209 = scmp.eq.s32.totalorder %s31, 0
      %p210 = por %p208, %p209
      %s211 = ssub.s32 %s25, %s32
      %p212 = scmp.eq.s32.totalorder %s211, 0
      %s214 = sadd.s32 %s213, 1
      %s215 = scalar_select %p212, %s213, %s214
      %p218 = pneg %p212
      %p219 = scmp.eq.s32.totalorder %s25, 1
      %p220 = por %p218, %p219
      %p221 = scmp.ne.s32.totalorder %s213, %s216
      %p222 = scmp.eq.s32.totalorder %s25, 0
      %p223 = por %p221, %p222
      %p224 = scmp.ne.s32.totalorder %s213, %s216
      %p225 = scmp.eq.s32.totalorder %s30, 1
      %p226 = por %p224, %p225
      %p227 = scmp.ne.s32.totalorder %s216, %s217
      %p228 = scmp.eq.s32.totalorder %s30, 0
      %p229 = por %p227, %p228
      %p230 = scmp.ne.s32.totalorder %s216, %s217
      %p231 = scmp.eq.s32.totalorder %s31, 1
      %p232 = por %p230, %p231
      %p234 = scmp.ne.s32.totalorder %s217, %s233
      %p235 = scmp.eq.s32.totalorder %s31, 0
      %p236 = por %p234, %p235
      %s237 = ssub.s32 %s25, %s32
      %p238 = scmp.eq.s32.totalorder %s237, 0
      %s240 = sadd.s32 %s239, 1
      %s241 = scalar_select %p238, %s239, %s240
      %p244 = pneg %p238
      %p245 = scmp.eq.s32.totalorder %s25, 1
      %p246 = por %p244, %p245
      %p247 = scmp.ne.s32.totalorder %s239, %s242
      %p248 = scmp.eq.s32.totalorder %s25, 0
      %p249 = por %p247, %p248
      %p250 = scmp.ne.s32.totalorder %s239, %s242
      %p251 = scmp.eq.s32.totalorder %s30, 1
      %p252 = por %p250, %p251
      %p253 = scmp.ne.s32.totalorder %s242, %s243
      %p254 = scmp.eq.s32.totalorder %s30, 0
      %p255 = por %p253, %p254
      %p256 = scmp.ne.s32.totalorder %s242, %s243
      %p257 = scmp.eq.s32.totalorder %s31, 1
      %p258 = por %p256, %p257
      %p260 = scmp.ne.s32.totalorder %s243, %s259
      %p261 = scmp.eq.s32.totalorder %s31, 0
      %p262 = por %p260, %p261
      %s263 = ssub.s32 %s25, %s32
      %p264 = scmp.eq.s32.totalorder %s263, 0
      %s266 = sadd.s32 %s265, 1
      %s267 = scalar_select %p264, %s265, %s266
      %p270 = pneg %p264
      %p271 = scmp.eq.s32.totalorder %s25, 1
      %p272 = por %p270, %p271
      %p273 = scmp.ne.s32.totalorder %s265, %s268
      %p274 = scmp.eq.s32.totalorder %s25, 0
      %p275 = por %p273, %p274
      %p276 = scmp.ne.s32.totalorder %s265, %s268
      %p277 = scmp.eq.s32.totalorder %s30, 1
      %p278 = por %p276, %p277
      %p279 = scmp.ne.s32.totalorder %s268, %s269
      %p280 = scmp.eq.s32.totalorder %s30, 0
      %p281 = por %p279, %p280
      %p282 = scmp.ne.s32.totalorder %s268, %s269
      %p283 = scmp.eq.s32.totalorder %s31, 1
      %p284 = por %p282, %p283
      %p286 = scmp.ne.s32.totalorder %s269, %s285
      %p287 = scmp.eq.s32.totalorder %s31, 0
      %p288 = por %p286, %p287
      %s289 = ssub.s32 %s25, %s32
      %p290 = scmp.eq.s32.totalorder %s289, 0
      %s292 = sadd.s32 %s291, 1
      %s293 = scalar_select %p290, %s291, %s292
      %p296 = pneg %p290
      %p297 = scmp.eq.s32.totalorder %s25, 1
      %p298 = por %p296, %p297
      %p299 = scmp.ne.s32.totalorder %s291, %s294
      %p300 = scmp.eq.s32.totalorder %s25, 0
      %p301 = por %p299, %p300
      %p302 = scmp.ne.s32.totalorder %s291, %s294
      %p303 = scmp.eq.s32.totalorder %s30, 1
      %p304 = por %p302, %p303
      %p305 = scmp.ne.s32.totalorder %s294, %s295
      %p306 = scmp.eq.s32.totalorder %s30, 0
      %p307 = por %p305, %p306
      %p308 = scmp.ne.s32.totalorder %s294, %s295
      %p309 = scmp.eq.s32.totalorder %s31, 1
      %p310 = por %p308, %p309
      %p312 = scmp.ne.s32.totalorder %s295, %s311
      %p313 = scmp.eq.s32.totalorder %s31, 0
      %p314 = por %p312, %p313
      %s315 = ssub.s32 %s25, %s32
      %p316 = scmp.eq.s32.totalorder %s315, 0
      %s318 = sadd.s32 %s317, 1
      %s319 = scalar_select %p316, %s317, %s318
      %p322 = pneg %p316
      %p323 = scmp.eq.s32.totalorder %s25, 1
      %p324 = por %p322, %p323
      %p325 = scmp.ne.s32.totalorder %s317, %s320
      %p326 = scmp.eq.s32.totalorder %s25, 0
      %p327 = por %p325, %p326
      %p328 = scmp.ne.s32.totalorder %s317, %s320
      %p329 = scmp.eq.s32.totalorder %s30, 1
      %p330 = por %p328, %p329
      %p331 = scmp.ne.s32.totalorder %s320, %s321
      %p332 = scmp.eq.s32.totalorder %s30, 0
      %p333 = por %p331, %p332
      %p334 = scmp.ne.s32.totalorder %s320, %s321
      %p335 = scmp.eq.s32.totalorder %s31, 1
      %p336 = por %p334, %p335
      %p338 = scmp.ne.s32.totalorder %s321, %s337
      %p339 = scmp.eq.s32.totalorder %s31, 0
      %p340 = por %p338, %p339
      %s341 = ssub.s32 %s25, %s32
      %p342 = scmp.eq.s32.totalorder %s341, 0
      %s344 = sadd.s32 %s343, 1
      %s345 = scalar_select %p342, %s343, %s344
      %p348 = pneg %p342
      %p349 = scmp.eq.s32.totalorder %s25, 1
      %p350 = por %p348, %p349
      %p351 = scmp.ne.s32.totalorder %s343, %s346
      %p352 = scmp.eq.s32.totalorder %s25, 0
      %p353 = por %p351, %p352
      %p354 = scmp.ne.s32.totalorder %s343, %s346
      %p355 = scmp.eq.s32.totalorder %s30, 1
      %p356 = por %p354, %p355
      %p357 = scmp.ne.s32.totalorder %s346, %s347
      %p358 = scmp.eq.s32.totalorder %s30, 0
      %p359 = por %p357, %p358
      %p360 = scmp.ne.s32.totalorder %s346, %s347
      %p361 = scmp.eq.s32.totalorder %s31, 1
      %p362 = por %p360, %p361
      %p364 = scmp.ne.s32.totalorder %s347, %s363
      %p365 = scmp.eq.s32.totalorder %s31, 0
      %p366 = por %p364, %p365
      %s367 = ssub.s32 %s25, %s32
      %p368 = scmp.eq.s32.totalorder %s367, 0
      %s370 = sadd.s32 %s369, 1
      %s371 = scalar_select %p368, %s369, %s370
      %p374 = pneg %p368
      %p375 = scmp.eq.s32.totalorder %s25, 1
      %p376 = por %p374, %p375
      %p377 = scmp.ne.s32.totalorder %s369, %s372
      %p378 = scmp.eq.s32.totalorder %s25, 0
      %p379 = por %p377, %p378
      %p380 = scmp.ne.s32.totalorder %s369, %s372
      %p381 = scmp.eq.s32.totalorder %s30, 1
      %p382 = por %p380, %p381
      %p383 = scmp.ne.s32.totalorder %s372, %s373
      %p384 = scmp.eq.s32.totalorder %s30, 0
      %p385 = por %p383, %p384
      %p386 = scmp.ne.s32.totalorder %s372, %s373
      %p387 = scmp.eq.s32.totalorder %s31, 1
      %p388 = por %p386, %p387
      %p390 = scmp.ne.s32.totalorder %s373, %s389
      %p391 = scmp.eq.s32.totalorder %s31, 0
      %p392 = por %p390, %p391
      %s394 = sadd.s32 %s393, 1
      %p397 = scmp.eq.s32.totalorder %s25, 1
      %p398 = scmp.ne.s32.totalorder %s393, %s395
      %p399 = scmp.eq.s32.totalorder %s25, 0
      %p400 = por %p398, %p399
      %p401 = scmp.ne.s32.totalorder %s393, %s395
      %p402 = scmp.eq.s32.totalorder %s30, 1
      %p403 = por %p401, %p402
      %p404 = scmp.ne.s32.totalorder %s395, %s396
      %p405 = scmp.eq.s32.totalorder %s30, 0
      %p406 = por %p404, %p405
      %p407 = scmp.ne.s32.totalorder %s395, %s396
      %p408 = scmp.eq.s32.totalorder %s31, 1
      %p409 = por %p407, %p408
      %p411 = scmp.ne.s32.totalorder %s396, %s410
      %p412 = scmp.eq.s32.totalorder %s31, 0
      %p413 = por %p411, %p412
      %p414 = scmp.le.s32.totalorder 1, %s25
      %p415 = scmp.lt.s32.totalorder %s25, 3
      %p416 = pnand %p414, %p415
      %p417 = pneg %p416
      // Predicated region
      $region9: #{gine_forward_pallas.1} parent=5 // pred_check
        _
      $region10: #{gine_forward_pallas.1} parent=5 // pred_check_branch
        %419 = sbr.rel (%p416) target = $region12
      $region11: #{gine_forward_pallas.1} parent=5 // pred_region
        %s420 = ssub.s32 %s25, 1
        // Predicated region
        $region13: #{gine_forward_pallas.1} parent=11 // pred_check
          %p421 = pneg %p46
        $region14: #{gine_forward_pallas.1} parent=11 // pred_check_branch
          %423 = sbr.rel (%p421) target = $region16
        $region15: #{gine_forward_pallas.1} parent=11 // pred_region
          %425 = vsyncadd [#allocation4], 0
          %s427 = sshll.u32 %s0, 4
          %s428 = int_to_ptr.vmem [resolvable:$true] %s427
          %430 = dma.vmem_to_smem %s428, 16, [#allocation2], [#allocation4]
        $region16: #{gine_forward_pallas.1} parent=11 // pred_fallthru
          _
        // Predicated region
        $region17: #{gine_forward_pallas.1} parent=11 // pred_check
          %p431 = pneg %p67
        $region18: #{gine_forward_pallas.1} parent=11 // pred_check_branch
          %433 = sbr.rel (%p431) target = $region20
        $region19: #{gine_forward_pallas.1} parent=11 // pred_region
          _
        $region20: #{gine_forward_pallas.1} parent=11 // pred_fallthru
          _
        // Predicated region
        $region21: #{gine_forward_pallas.1} parent=11 // pred_check
          %p434 = pneg %p88
        $region22: #{gine_forward_pallas.1} parent=11 // pred_check_branch
          %436 = sbr.rel (%p434) target = $region24
        $region23: #{gine_forward_pallas.1} parent=11 // pred_region
          _
        $region24: #{gine_forward_pallas.1} parent=11 // pred_fallthru
          _
        // Predicated region
        $region25: #{gine_forward_pallas.1} parent=11 // pred_check
          %p437 = pneg %p109
        $region26: #{gine_forward_pallas.1} parent=11 // pred_check_branch
          %439 = sbr.rel (%p437) target = $region28
        $region27: #{gine_forward_pallas.1} parent=11 // pred_region
          _
        $region28: #{gine_forward_pallas.1} parent=11 // pred_fallthru
          _
        // Predicated region
        $region29: #{gine_forward_pallas.1} parent=11 // pred_check
          %p440 = pneg %p130
        $region30: #{gine_forward_pallas.1} parent=11 // pred_check_branch
          %442 = sbr.rel (%p440) target = $region32
        $region31: #{gine_forward_pallas.1} parent=11 // pred_region
          _
        $region32: #{gine_forward_pallas.1} parent=11 // pred_fallthru
          _
        // Predicated region
        $region33: #{gine_forward_pallas.1} parent=11 // pred_check
          %p443 = pneg %p151
        $region34: #{gine_forward_pallas.1} parent=11 // pred_check_branch
          %445 = sbr.rel (%p443) target = $region36
        $region35: #{gine_forward_pallas.1} parent=11 // pred_region
          _
        $region36: #{gine_forward_pallas.1} parent=11 // pred_fallthru
          _
      $region12: #{gine_forward_pallas.1} parent=5 // pred_fallthru
        _
      %p446 = scmp.lt.s32.totalorder %s25, 2
      // Predicated region
      $region37: #{gine_forward_pallas.1} parent=5 // pred_check
        %p447 = pneg %p446
      $region38: #{gine_forward_pallas.1} parent=5 // pred_check_branch
        %449 = sbr.rel (%p447) target = $region40
      $region39: #{gine_forward_pallas.1} parent=5 // pred_region
        // Predicated region
        $region41: #{gine_forward_pallas.1} parent=39 // pred_check
          %p450 = pneg %p171
        $region42: #{gine_forward_pallas.1} parent=39 // pred_check_branch
          %452 = sbr.rel (%p450) target = $region44
        $region43: #{gine_forward_pallas.1} parent=39 // pred_region
          %p453 = scmp.lt.s32.totalorder %s25, 1
          %s454 = scalar_select %p453, %s25, 1
          %s455 = smul.addr %s454, 4
          %s456 = scalar_lea.vmem %s6, %s455
        $region44: #{gine_forward_pallas.1} parent=39 // pred_fallthru
          _
        // Predicated region
        $region45: #{gine_forward_pallas.1} parent=39 // pred_check
          %p457 = pneg %p197
        $region46: #{gine_forward_pallas.1} parent=39 // pred_check_branch
          %459 = sbr.rel (%p457) target = $region48
        $region47: #{gine_forward_pallas.1} parent=39 // pred_region
          %p460 = scmp.lt.s32.totalorder %s25, 1
          %s461 = scalar_select %p460, %s25, 1
          %s462 = smul.addr %s461, 16
          %s463 = smul.addr %s462, 4
          %s464 = scalar_lea.vmem %s7, %s463
        $region48: #{gine_forward_pallas.1} parent=39 // pred_fallthru
          _
        // Predicated region
        $region49: #{gine_forward_pallas.1} parent=39 // pred_check
          %p465 = pneg %p223
        $region50: #{gine_forward_pallas.1} parent=39 // pred_check_branch
          %467 = sbr.rel (%p465) target = $region52
        $region51: #{gine_forward_pallas.1} parent=39 // pred_region
          %p468 = scmp.lt.s32.totalorder %s25, 1
          %s469 = scalar_select %p468, %s25, 1
          %s470 = scalar_lea.vmem %s8, %s469
        $region52: #{gine_forward_pallas.1} parent=39 // pred_fallthru
          _
        // Predicated region
        $region53: #{gine_forward_pallas.1} parent=39 // pred_check
          %p471 = pneg %p249
        $region54: #{gine_forward_pallas.1} parent=39 // pred_check_branch
          %473 = sbr.rel (%p471) target = $region56
        $region55: #{gine_forward_pallas.1} parent=39 // pred_region
          %p474 = scmp.lt.s32.totalorder %s25, 1
          %s475 = scalar_select %p474, %s25, 1
          %s476 = smul.addr %s475, 16
          %s477 = smul.addr %s476, 4
          %s478 = scalar_lea.vmem %s9, %s477
        $region56: #{gine_forward_pallas.1} parent=39 // pred_fallthru
          _
        // Predicated region
        $region57: #{gine_forward_pallas.1} parent=39 // pred_check
          %p479 = pneg %p275
        $region58: #{gine_forward_pallas.1} parent=39 // pred_check_branch
          %481 = sbr.rel (%p479) target = $region60
        $region59: #{gine_forward_pallas.1} parent=39 // pred_region
          %p482 = scmp.lt.s32.totalorder %s25, 1
          %s483 = scalar_select %p482, %s25, 1
          %s484 = scalar_lea.vmem %s10, %s483
        $region60: #{gine_forward_pallas.1} parent=39 // pred_fallthru
          _
        // Predicated region
        $region61: #{gine_forward_pallas.1} parent=39 // pred_check
          %p485 = pneg %p301
        $region62: #{gine_forward_pallas.1} parent=39 // pred_check_branch
          %487 = sbr.rel (%p485) target = $region64
        $region63: #{gine_forward_pallas.1} parent=39 // pred_region
          %p488 = scmp.lt.s32.totalorder %s25, 1
          %s489 = scalar_select %p488, %s25, 1
          %s490 = smul.addr %s489, 16
          %s491 = smul.addr %s490, 4
          %s492 = scalar_lea.vmem %s11, %s491
        $region64: #{gine_forward_pallas.1} parent=39 // pred_fallthru
          _
        // Predicated region
        $region65: #{gine_forward_pallas.1} parent=39 // pred_check
          %p493 = pneg %p327
        $region66: #{gine_forward_pallas.1} parent=39 // pred_check_branch
          %495 = sbr.rel (%p493) target = $region68
        $region67: #{gine_forward_pallas.1} parent=39 // pred_region
          %p496 = scmp.lt.s32.totalorder %s25, 1
          %s497 = scalar_select %p496, %s25, 1
          %s498 = scalar_lea.vmem %s12, %s497
        $region68: #{gine_forward_pallas.1} parent=39 // pred_fallthru
          _
        // Predicated region
        $region69: #{gine_forward_pallas.1} parent=39 // pred_check
          %p499 = pneg %p353
        $region70: #{gine_forward_pallas.1} parent=39 // pred_check_branch
          %501 = sbr.rel (%p499) target = $region72
        $region71: #{gine_forward_pallas.1} parent=39 // pred_region
          %s502 = sand.u32 %s343, 1
          %s503 = scalar_lea.sflag [#allocation3], %s502
          %s504 = sand.u32 %s343, 1
          %s505 = smul.addr %s504, 64
          %s506 = scalar_lea.vmem [#allocation5], %s505
          %508 = vsyncadd %s503, 0
          %s509 = smul.addr %s25, 16
          %s510 = smul.addr %s509, 4
          %s511 = scalar_lea.hbm %s13, %s510
          %s512 = sshll.u32 %s511, 4
          %s513 = int_to_ptr.hbm [resolvable:$true] %s512
          %s514 = sshll.u32 %s506, 4
          %s515 = int_to_ptr.vmem [resolvable:$true] %s514
          %520 = dma.hbm_to_vmem [thread:$0]  %s513, 1024, %s515, %s503, 64, 64, 4
        $region72: #{gine_forward_pallas.1} parent=39 // pred_fallthru
          _
        // Predicated region
        $region73: #{gine_forward_pallas.1} parent=39 // pred_check
          %p521 = pneg %p379
        $region74: #{gine_forward_pallas.1} parent=39 // pred_check_branch
          %523 = sbr.rel (%p521) target = $region76
        $region75: #{gine_forward_pallas.1} parent=39 // pred_region
          %p524 = scmp.lt.s32.totalorder %s25, 1
          %s525 = scalar_select %p524, %s25, 1
          %s526 = scalar_lea.vmem %s14, %s525
        $region76: #{gine_forward_pallas.1} parent=39 // pred_fallthru
          _
      $region40: #{gine_forward_pallas.1} parent=5 // pred_fallthru
        _
      %p527 = scmp.le.s32.totalorder 1, %s25
      %p528 = scmp.lt.s32.totalorder %s25, 3
      %p529 = pnand %p527, %p528
      %p530 = pneg %p529
      // Predicated region
      $region77: #{gine_forward_pallas.1} parent=5 // pred_check
        _
      $region78: #{gine_forward_pallas.1} parent=5 // pred_check_branch
        %532 = sbr.rel (%p529) target = $region80
      $region79: #{gine_forward_pallas.1} parent=5 // pred_region
        %s533 = ssub.s32 %s25, 1
        // Predicated region
        $region81: #{gine_forward_pallas.1} parent=79 // pred_check
          %p534 = pneg %p46
        $region82: #{gine_forward_pallas.1} parent=79 // pred_check_branch
          %536 = sbr.rel (%p534) target = $region84
        $region83: #{gine_forward_pallas.1} parent=79 // pred_region
          %538 = dma.done [#allocation4], 16
        $region84: #{gine_forward_pallas.1} parent=79 // pred_fallthru
          _
        %s539 = sand.u32 %s346, 1
        %s540 = scalar_lea.sflag [#allocation3], %s539
        %s541 = sand.u32 %s346, 1
        %s542 = smul.addr %s541, 64
        %s543 = scalar_lea.vmem [#allocation5], %s542
        // Predicated region
        $region85: #{gine_forward_pallas.1} parent=79 // pred_check
          %p544 = pneg %p359
        $region86: #{gine_forward_pallas.1} parent=79 // pred_check_branch
          %546 = sbr.rel (%p544) target = $region88
        $region87: #{gine_forward_pallas.1} parent=79 // pred_region
          %548 = dma.done %s540, 1024
        $region88: #{gine_forward_pallas.1} parent=79 // pred_fallthru
          _
        %549 = sfence
        %p550 = pneg %p46
        %p551 = pneg %p43
        %p552 = pneg %p67
        %p553 = pneg %p64
        %p554 = pneg %p88
        %p555 = pneg %p85
        %p556 = pneg %p109
        %p557 = pneg %p106
        %p558 = pneg %p130
        %p559 = pneg %p127
        %p560 = pneg %p151
        %p561 = pneg %p148
        %p562 = scmp.lt.s32.totalorder %s30, 1
        %s563 = scalar_select %p562, %s30, 1
        %s564 = smul.addr %s563, 4
        %s565 = scalar_lea.vmem %s6, %s564
        %p566 = pneg %p177
        %p567 = pneg %p174
        %p568 = scmp.lt.s32.totalorder %s30, 1
        %s569 = scalar_select %p568, %s30, 1
        %s570 = smul.addr %s569, 16
        %s571 = smul.addr %s570, 4
        %s572 = scalar_lea.vmem %s7, %s571
        %p573 = pneg %p203
        %p574 = pneg %p200
        %p575 = scmp.lt.s32.totalorder %s30, 1
        %s576 = scalar_select %p575, %s30, 1
        %s577 = scalar_lea.vmem %s8, %s576
        %p578 = pneg %p229
        %p579 = pneg %p226
        %p580 = scmp.lt.s32.totalorder %s30, 1
        %s581 = scalar_select %p580, %s30, 1
        %s582 = smul.addr %s581, 16
        %s583 = smul.addr %s582, 4
        %s584 = scalar_lea.vmem %s9, %s583
        %p585 = pneg %p255
        %p586 = pneg %p252
        %p587 = scmp.lt.s32.totalorder %s30, 1
        %s588 = scalar_select %p587, %s30, 1
        %s589 = scalar_lea.vmem %s10, %s588
        %p590 = pneg %p281
        %p591 = pneg %p278
        %p592 = scmp.lt.s32.totalorder %s30, 1
        %s593 = scalar_select %p592, %s30, 1
        %s594 = smul.addr %s593, 16
        %s595 = smul.addr %s594, 4
        %s596 = scalar_lea.vmem %s11, %s595
        %p597 = pneg %p307
        %p598 = pneg %p304
        %p599 = scmp.lt.s32.totalorder %s30, 1
        %s600 = scalar_select %p599, %s30, 1
        %s601 = scalar_lea.vmem %s12, %s600
        %p602 = pneg %p333
        %p603 = pneg %p330
        %s604 = sand.u32 %s346, 1
        %s605 = scalar_lea.sflag [#allocation3], %s604
        %s606 = sand.u32 %s346, 1
        %s607 = smul.addr %s606, 64
        %s608 = scalar_lea.vmem [#allocation5], %s607
        %p609 = pneg %p359
        %p610 = pneg %p356
        %p611 = scmp.lt.s32.totalorder %s30, 1
        %s612 = scalar_select %p611, %s30, 1
        %s613 = scalar_lea.vmem %s14, %s612
        %p614 = pneg %p385
        %p615 = pneg %p382
        %p616 = pneg %p406
        %p617 = pneg %p403
        %p618 = scmp.lt.s32.totalorder %s30, 1
        %s619 = scalar_select %p618, %s30, 1
        %s620 = smul.addr %s619, 4
        %s621 = scalar_lea.vmem %s6, %s620
        %p622 = scmp.lt.s32.totalorder %s30, 1
        %s623 = scalar_select %p622, %s30, 1
        %s624 = smul.addr %s623, 16
        %s625 = smul.addr %s624, 4
        %s626 = scalar_lea.vmem %s7, %s625
        %p627 = scmp.lt.s32.totalorder %s30, 1
        %s628 = scalar_select %p627, %s30, 1
        %s629 = scalar_lea.vmem %s8, %s628
        %p630 = scmp.lt.s32.totalorder %s30, 1
        %s631 = scalar_select %p630, %s30, 1
        %s632 = smul.addr %s631, 16
        %s633 = smul.addr %s632, 4
        %s634 = scalar_lea.vmem %s9, %s633
        %p635 = scmp.lt.s32.totalorder %s30, 1
        %s636 = scalar_select %p635, %s30, 1
        %s637 = scalar_lea.vmem %s10, %s636
        %p638 = scmp.lt.s32.totalorder %s30, 1
        %s639 = scalar_select %p638, %s30, 1
        %s640 = smul.addr %s639, 16
        %s641 = smul.addr %s640, 4
        %s642 = scalar_lea.vmem %s11, %s641
        %p643 = scmp.lt.s32.totalorder %s30, 1
        %s644 = scalar_select %p643, %s30, 1
        %s645 = scalar_lea.vmem %s12, %s644
        %p646 = scmp.lt.s32.totalorder %s30, 1
        %s647 = scalar_select %p646, %s30, 1
        %s648 = scalar_lea.vmem %s14, %s647
        %p650 = scmp.eq.s32.totalorder %s30, 0
        // Predicated region
        $region89: #{gine_forward_pallas.1} parent=79 // pred_check
          %p651 = pneg %p650
        $region90: #{gine_forward_pallas.1} parent=79 // pred_check_branch
          %653 = sbr.rel (%p651) target = $region92
        $region91: #{gine_forward_pallas.1} parent=79 // pred_region
          %v654 = vld [vmem:[%s1] sm:$0xff]
          %v655 = vld [vmem:[%s1 + $0x8] sm:$0xff]
          %v656 = vld [vmem:[%s1 + $0x10] sm:$0xff]
          %v657 = vld [vmem:[%s1 + $0x18] sm:$0xff]
          %v658 = vld [vmem:[%s1 + $0x20] sm:$0xff]
          %v659 = vld [vmem:[%s1 + $0x28] sm:$0xff]
          %v660 = vld [vmem:[%s1 + $0x30] sm:$0xff]
          %v661 = vld [vmem:[%s1 + $0x38] sm:$0xff]
          %v662 = vld [vmem:[%s1 + $0x40] sm:$0xff]
          %v663 = vld [vmem:[%s1 + $0x48] sm:$0xff]
          %v664 = vld [vmem:[%s1 + $0x50] sm:$0xff]
          %v665 = vld [vmem:[%s1 + $0x58] sm:$0xff]
          %v666 = vld [vmem:[%s1 + $0x60] sm:$0xff]
          %v667 = vld [vmem:[%s1 + $0x68] sm:$0xff]
          %v668 = vld [vmem:[%s1 + $0x70] sm:$0xff]
          %v669 = vld [vmem:[%s1 + $0x78] sm:$0xff]
          %670 = vst [vmem:[%s15] sm:$0xff] %v654
          %671 = vst [vmem:[%s15 + $0x8] sm:$0xff] %v655
          %672 = vst [vmem:[%s15 + $0x10] sm:$0xff] %v656
          %673 = vst [vmem:[%s15 + $0x18] sm:$0xff] %v657
          %674 = vst [vmem:[%s15 + $0x20] sm:$0xff] %v658
          %675 = vst [vmem:[%s15 + $0x28] sm:$0xff] %v659
          %676 = vst [vmem:[%s15 + $0x30] sm:$0xff] %v660
          %677 = vst [vmem:[%s15 + $0x38] sm:$0xff] %v661
          %678 = vst [vmem:[%s15 + $0x40] sm:$0xff] %v662
          %679 = vst [vmem:[%s15 + $0x48] sm:$0xff] %v663
          %680 = vst [vmem:[%s15 + $0x50] sm:$0xff] %v664
          %681 = vst [vmem:[%s15 + $0x58] sm:$0xff] %v665
          %682 = vst [vmem:[%s15 + $0x60] sm:$0xff] %v666
          %683 = vst [vmem:[%s15 + $0x68] sm:$0xff] %v667
          %684 = vst [vmem:[%s15 + $0x70] sm:$0xff] %v668
          %685 = vst [vmem:[%s15 + $0x78] sm:$0xff] %v669
        $region92: #{gine_forward_pallas.1} parent=79 // pred_fallthru
          _
        %v686 = vld [vmem:[%s15] sm:$0xff]
        %v687 = vld [vmem:[%s15 + $0x8] sm:$0xff]
        %v688 = vld [vmem:[%s15 + $0x10] sm:$0xff]
        %v689 = vld [vmem:[%s15 + $0x18] sm:$0xff]
        %v690 = vld [vmem:[%s15 + $0x20] sm:$0xff]
        %v691 = vld [vmem:[%s15 + $0x28] sm:$0xff]
        %v692 = vld [vmem:[%s15 + $0x30] sm:$0xff]
        %v693 = vld [vmem:[%s15 + $0x38] sm:$0xff]
        %v694 = vld [vmem:[%s15 + $0x40] sm:$0xff]
        %v695 = vld [vmem:[%s15 + $0x48] sm:$0xff]
        %v696 = vld [vmem:[%s15 + $0x50] sm:$0xff]
        %v697 = vld [vmem:[%s15 + $0x58] sm:$0xff]
        %v698 = vld [vmem:[%s15 + $0x60] sm:$0xff]
        %v699 = vld [vmem:[%s15 + $0x68] sm:$0xff]
        %v700 = vld [vmem:[%s15 + $0x70] sm:$0xff]
        %v701 = vld [vmem:[%s15 + $0x78] sm:$0xff]
        %v702 = vld [vmem:[%s2] sm:$0xf]
        %v703 = vld [vmem:[%s2 + $0x4] sm:$0xf]
        %v704 = vld [vmem:[%s2 + $0x8] sm:$0xf]
        %v705 = vld [vmem:[%s2 + $0xc] sm:$0xf]
        %v706 = vld [vmem:[%s2 + $0x10] sm:$0xf]
        %v707 = vld [vmem:[%s2 + $0x14] sm:$0xf]
        %v708 = vld [vmem:[%s2 + $0x18] sm:$0xf]
        %v709 = vld [vmem:[%s2 + $0x1c] sm:$0xf]
        %v710 = vld [vmem:[%s2 + $0x20] sm:$0xf]
        %v711 = vld [vmem:[%s2 + $0x24] sm:$0xf]
        %v712 = vld [vmem:[%s2 + $0x28] sm:$0xf]
        %v713 = vld [vmem:[%s2 + $0x2c] sm:$0xf]
        %v714 = vld [vmem:[%s2 + $0x30] sm:$0xf]
        %v715 = vld [vmem:[%s2 + $0x34] sm:$0xf]
        %v716 = vld [vmem:[%s2 + $0x38] sm:$0xf]
        %v717 = vld [vmem:[%s2 + $0x3c] sm:$0xf]
        %v718 = vld [vmem:[%s626] sm:$0xf]
        %v719 = vld [vmem:[%s626 + $0x4] sm:$0xf]
        %v720 = vld [vmem:[%s626 + $0x8] sm:$0xf]
        %v721 = vld [vmem:[%s626 + $0xc] sm:$0xf]
        %v722 = vld [vmem:[%s626 + $0x10] sm:$0xf]
        %v723 = vld [vmem:[%s626 + $0x14] sm:$0xf]
        %v724 = vld [vmem:[%s626 + $0x18] sm:$0xf]
        %v725 = vld [vmem:[%s626 + $0x1c] sm:$0xf]
        %v726 = vld [vmem:[%s626 + $0x20] sm:$0xf]
        %v727 = vld [vmem:[%s626 + $0x24] sm:$0xf]
        %v728 = vld [vmem:[%s626 + $0x28] sm:$0xf]
        %v729 = vld [vmem:[%s626 + $0x2c] sm:$0xf]
        %v730 = vld [vmem:[%s626 + $0x30] sm:$0xf]
        %v731 = vld [vmem:[%s626 + $0x34] sm:$0xf]
        %v732 = vld [vmem:[%s626 + $0x38] sm:$0xf]
        %v733 = vld [vmem:[%s626 + $0x3c] sm:$0xf]
        %v734 = vld [vmem:[%s629] sm:$0x1]
        %v736 = vperm.slane %v734, 0
        %v754 = vunpack.c.l.b16 %v702
        %v755 = vunpack.c.l.b16 %v703
        %v756 = vunpack.c.l.b16 %v704
        %v757 = vunpack.c.l.b16 %v705
        %v758 = vunpack.c.l.b16 %v706
        %v759 = vunpack.c.l.b16 %v707
        %v760 = vunpack.c.l.b16 %v708
        %v761 = vunpack.c.l.b16 %v709
        %v762 = vunpack.c.l.b16 %v710
        %v763 = vunpack.c.l.b16 %v711
        %v764 = vunpack.c.l.b16 %v712
        %v765 = vunpack.c.l.b16 %v713
        %v766 = vunpack.c.l.b16 %v714
        %v767 = vunpack.c.l.b16 %v715
        %v768 = vunpack.c.l.b16 %v716
        %v769 = vunpack.c.l.b16 %v717
        %v770 = vpack.c.b16 %v755, %v754
        %v771 = vpack.c.b16 %v757, %v756
        %v772 = vpack.c.b16 %v759, %v758
        %v773 = vpack.c.b16 %v761, %v760
        %v774 = vpack.c.b16 %v763, %v762
        %v775 = vpack.c.b16 %v765, %v764
        %v776 = vpack.c.b16 %v767, %v766
        %v777 = vpack.c.b16 %v769, %v768
        %v802 = vunpack.c.l.b16 %v718
        %v803 = vunpack.c.l.b16 %v719
        %v804 = vunpack.c.l.b16 %v720
        %v805 = vunpack.c.l.b16 %v721
        %v806 = vunpack.c.l.b16 %v722
        %v807 = vunpack.c.l.b16 %v723
        %v808 = vunpack.c.l.b16 %v724
        %v809 = vunpack.c.l.b16 %v725
        %v810 = vunpack.c.l.b16 %v726
        %v811 = vunpack.c.l.b16 %v727
        %v812 = vunpack.c.l.b16 %v728
        %v813 = vunpack.c.l.b16 %v729
        %v814 = vunpack.c.l.b16 %v730
        %v815 = vunpack.c.l.b16 %v731
        %v816 = vunpack.c.l.b16 %v732
        %v817 = vunpack.c.l.b16 %v733
        %v818 = vpack.c.b16 %v803, %v802
        %v819 = vpack.c.b16 %v805, %v804
        %v820 = vpack.c.b16 %v807, %v806
        %v821 = vpack.c.b16 %v809, %v808
        %v822 = vpack.c.b16 %v811, %v810
        %v823 = vpack.c.b16 %v813, %v812
        %v824 = vpack.c.b16 %v815, %v814
        %v825 = vpack.c.b16 %v817, %v816
        %834 = vmatpush.bf16.msra.mxu0 %v825
        %835 = vmatpush.bf16.msra.mxu0 %v824
        %836 = vmatpush.bf16.msra.mxu0 %v823
        %837 = vmatpush.bf16.msra.mxu0 %v822
        %838 = vmatpush.bf16.msra.mxu0 %v821
        %839 = vmatpush.bf16.msra.mxu0 %v820
        %840 = vmatpush.bf16.msra.mxu0 %v819
        %841 = vmatpush.bf16.msra.mxu0 %v818
        %842 = vmatmul.bf16.gmra.mxu0 %v770
        %v843 = vpop.f32.mrf.mxu0
        %v844 = vadd.f32 %v736, %v843
        %v845 = vpop.f32.mrf.mxu0
        %v846 = vadd.f32 %v736, %v845
        %847 = vmatmul.bf16.gmra.mxu0 %v771
        %v848 = vpop.f32.mrf.mxu0
        %v849 = vadd.f32 %v736, %v848
        %v850 = vpop.f32.mrf.mxu0
        %v851 = vadd.f32 %v736, %v850
        %852 = vmatmul.bf16.gmra.mxu0 %v772
        %v853 = vpop.f32.mrf.mxu0
        %v854 = vadd.f32 %v736, %v853
        %v855 = vpop.f32.mrf.mxu0
        %v856 = vadd.f32 %v736, %v855
        %857 = vmatmul.bf16.gmra.mxu0 %v773
        %v858 = vpop.f32.mrf.mxu0
        %v859 = vadd.f32 %v736, %v858
        %v860 = vpop.f32.mrf.mxu0
        %v861 = vadd.f32 %v736, %v860
        %862 = vmatmul.bf16.gmra.mxu0 %v774
        %v863 = vpop.f32.mrf.mxu0
        %v864 = vadd.f32 %v736, %v863
        %v865 = vpop.f32.mrf.mxu0
        %v866 = vadd.f32 %v736, %v865
        %867 = vmatmul.bf16.gmra.mxu0 %v775
        %v868 = vpop.f32.mrf.mxu0
        %v869 = vadd.f32 %v736, %v868
        %v870 = vpop.f32.mrf.mxu0
        %v871 = vadd.f32 %v736, %v870
        %872 = vmatmul.bf16.gmra.mxu0 %v776
        %v873 = vpop.f32.mrf.mxu0
        %v874 = vadd.f32 %v736, %v873
        %v875 = vpop.f32.mrf.mxu0
        %v876 = vadd.f32 %v736, %v875
        %877 = vmatmul.bf16.gmra.mxu0 %v777
        %v878 = vpop.f32.mrf.mxu0
        %v879 = vadd.f32 %v736, %v878
        %v880 = vpop.f32.mrf.mxu0
        %v881 = vadd.f32 %v736, %v880
        %882 = vdwg.mxu0
        %v883 = vmax.f32 %v844, 0.0
        %v884 = vmax.f32 %v846, 0.0
        %v885 = vmax.f32 %v849, 0.0
        %v886 = vmax.f32 %v851, 0.0
        %v887 = vmax.f32 %v854, 0.0
        %v888 = vmax.f32 %v856, 0.0
        %v889 = vmax.f32 %v859, 0.0
        %v890 = vmax.f32 %v861, 0.0
        %v891 = vmax.f32 %v864, 0.0
        %v892 = vmax.f32 %v866, 0.0
        %v893 = vmax.f32 %v869, 0.0
        %v894 = vmax.f32 %v871, 0.0
        %v895 = vmax.f32 %v874, 0.0
        %v896 = vmax.f32 %v876, 0.0
        %v897 = vmax.f32 %v879, 0.0
        %v898 = vmax.f32 %v881, 0.0
        %v899 = vpack.c.bf16 %v884, %v883
        %v900 = vpack.c.bf16 %v886, %v885
        %v901 = vpack.c.bf16 %v888, %v887
        %v902 = vpack.c.bf16 %v890, %v889
        %v903 = vpack.c.bf16 %v892, %v891
        %v904 = vpack.c.bf16 %v894, %v893
        %v905 = vpack.c.bf16 %v896, %v895
        %v906 = vpack.c.bf16 %v898, %v897
        %v907 = vld [vmem:[%s634] sm:$0xf]
        %v908 = vld [vmem:[%s634 + $0x4] sm:$0xf]
        %v909 = vld [vmem:[%s634 + $0x8] sm:$0xf]
        %v910 = vld [vmem:[%s634 + $0xc] sm:$0xf]
        %v911 = vld [vmem:[%s634 + $0x10] sm:$0xf]
        %v912 = vld [vmem:[%s634 + $0x14] sm:$0xf]
        %v913 = vld [vmem:[%s634 + $0x18] sm:$0xf]
        %v914 = vld [vmem:[%s634 + $0x1c] sm:$0xf]
        %v915 = vld [vmem:[%s634 + $0x20] sm:$0xf]
        %v916 = vld [vmem:[%s634 + $0x24] sm:$0xf]
        %v917 = vld [vmem:[%s634 + $0x28] sm:$0xf]
        %v918 = vld [vmem:[%s634 + $0x2c] sm:$0xf]
        %v919 = vld [vmem:[%s634 + $0x30] sm:$0xf]
        %v920 = vld [vmem:[%s634 + $0x34] sm:$0xf]
        %v921 = vld [vmem:[%s634 + $0x38] sm:$0xf]
        %v922 = vld [vmem:[%s634 + $0x3c] sm:$0xf]
        %v923 = vld [vmem:[%s637] sm:$0x1]
        %v925 = vperm.slane %v923, 0
        %v943 = vunpack.c.l.b16 %v907
        %v944 = vunpack.c.l.b16 %v908
        %v945 = vunpack.c.l.b16 %v909
        %v946 = vunpack.c.l.b16 %v910
        %v947 = vunpack.c.l.b16 %v911
        %v948 = vunpack.c.l.b16 %v912
        %v949 = vunpack.c.l.b16 %v913
        %v950 = vunpack.c.l.b16 %v914
        %v951 = vunpack.c.l.b16 %v915
        %v952 = vunpack.c.l.b16 %v916
        %v953 = vunpack.c.l.b16 %v917
        %v954 = vunpack.c.l.b16 %v918
        %v955 = vunpack.c.l.b16 %v919
        %v956 = vunpack.c.l.b16 %v920
        %v957 = vunpack.c.l.b16 %v921
        %v958 = vunpack.c.l.b16 %v922
        %v959 = vpack.c.b16 %v944, %v943
        %v960 = vpack.c.b16 %v946, %v945
        %v961 = vpack.c.b16 %v948, %v947
        %v962 = vpack.c.b16 %v950, %v949
        %v963 = vpack.c.b16 %v952, %v951
        %v964 = vpack.c.b16 %v954, %v953
        %v965 = vpack.c.b16 %v956, %v955
        %v966 = vpack.c.b16 %v958, %v957
        %975 = vmatpush.bf16.msra.mxu0 %v966
        %976 = vmatpush.bf16.msra.mxu0 %v965
        %977 = vmatpush.bf16.msra.mxu0 %v964
        %978 = vmatpush.bf16.msra.mxu0 %v963
        %979 = vmatpush.bf16.msra.mxu0 %v962
        %980 = vmatpush.bf16.msra.mxu0 %v961
        %981 = vmatpush.bf16.msra.mxu0 %v960
        %982 = vmatpush.bf16.msra.mxu0 %v959
        %983 = vmatmul.bf16.gmra.mxu0 %v899
        %v984 = vpop.f32.mrf.mxu0
        %v985 = vadd.f32 %v925, %v984
        %v986 = vpop.f32.mrf.mxu0
        %v987 = vadd.f32 %v925, %v986
        %988 = vmatmul.bf16.gmra.mxu0 %v900
        %v989 = vpop.f32.mrf.mxu0
        %v990 = vadd.f32 %v925, %v989
        %v991 = vpop.f32.mrf.mxu0
        %v992 = vadd.f32 %v925, %v991
        %993 = vmatmul.bf16.gmra.mxu0 %v901
        %v994 = vpop.f32.mrf.mxu0
        %v995 = vadd.f32 %v925, %v994
        %v996 = vpop.f32.mrf.mxu0
        %v997 = vadd.f32 %v925, %v996
        %998 = vmatmul.bf16.gmra.mxu0 %v902
        %v999 = vpop.f32.mrf.mxu0
        %v1000 = vadd.f32 %v925, %v999
        %v1001 = vpop.f32.mrf.mxu0
        %v1002 = vadd.f32 %v925, %v1001
        %1003 = vmatmul.bf16.gmra.mxu0 %v903
        %v1004 = vpop.f32.mrf.mxu0
        %v1005 = vadd.f32 %v925, %v1004
        %v1006 = vpop.f32.mrf.mxu0
        %v1007 = vadd.f32 %v925, %v1006
        %1008 = vmatmul.bf16.gmra.mxu0 %v904
        %v1009 = vpop.f32.mrf.mxu0
        %v1010 = vadd.f32 %v925, %v1009
        %v1011 = vpop.f32.mrf.mxu0
        %v1012 = vadd.f32 %v925, %v1011
        %1013 = vmatmul.bf16.gmra.mxu0 %v905
        %v1014 = vpop.f32.mrf.mxu0
        %v1015 = vadd.f32 %v925, %v1014
        %v1016 = vpop.f32.mrf.mxu0
        %v1017 = vadd.f32 %v925, %v1016
        %1018 = vmatmul.bf16.gmra.mxu0 %v906
        %v1019 = vpop.f32.mrf.mxu0
        %v1020 = vadd.f32 %v925, %v1019
        %v1021 = vpop.f32.mrf.mxu0
        %v1022 = vadd.f32 %v925, %v1021
        %1023 = vdwg.mxu0
        %v1024 = vadd.f32 %v686, %v985
        %v1025 = vadd.f32 %v687, %v987
        %v1026 = vadd.f32 %v688, %v990
        %v1027 = vadd.f32 %v689, %v992
        %v1028 = vadd.f32 %v690, %v995
        %v1029 = vadd.f32 %v691, %v997
        %v1030 = vadd.f32 %v692, %v1000
        %v1031 = vadd.f32 %v693, %v1002
        %v1032 = vadd.f32 %v694, %v1005
        %v1033 = vadd.f32 %v695, %v1007
        %v1034 = vadd.f32 %v696, %v1010
        %v1035 = vadd.f32 %v697, %v1012
        %v1036 = vadd.f32 %v698, %v1015
        %v1037 = vadd.f32 %v699, %v1017
        %v1038 = vadd.f32 %v700, %v1020
        %v1039 = vadd.f32 %v701, %v1022
        %v1040 = vld [vmem:[%s5] sm:$0xf]
        %v1041 = vld [vmem:[%s5 + $0x4] sm:$0xf]
        %v1042 = vld [vmem:[%s5 + $0x8] sm:$0xf]
        %v1043 = vld [vmem:[%s5 + $0xc] sm:$0xf]
        %v1044 = vld [vmem:[%s5 + $0x10] sm:$0xf]
        %v1045 = vld [vmem:[%s5 + $0x14] sm:$0xf]
        %v1046 = vld [vmem:[%s5 + $0x18] sm:$0xf]
        %v1047 = vld [vmem:[%s5 + $0x1c] sm:$0xf]
        %v1048 = vld [vmem:[%s5 + $0x20] sm:$0xf]
        %v1049 = vld [vmem:[%s5 + $0x24] sm:$0xf]
        %v1050 = vld [vmem:[%s5 + $0x28] sm:$0xf]
        %v1051 = vld [vmem:[%s5 + $0x2c] sm:$0xf]
        %v1052 = vld [vmem:[%s5 + $0x30] sm:$0xf]
        %v1053 = vld [vmem:[%s5 + $0x34] sm:$0xf]
        %v1054 = vld [vmem:[%s5 + $0x38] sm:$0xf]
        %v1055 = vld [vmem:[%s5 + $0x3c] sm:$0xf]
        %v1056 = vld [vmem:[%s621] sm:$0xf]
        %v1073 = vunpack.c.l.b16 %v1040
        %v1074 = vunpack.c.l.b16 %v1041
        %v1075 = vunpack.c.l.b16 %v1042
        %v1076 = vunpack.c.l.b16 %v1043
        %v1077 = vunpack.c.l.b16 %v1044
        %v1078 = vunpack.c.l.b16 %v1045
        %v1079 = vunpack.c.l.b16 %v1046
        %v1080 = vunpack.c.l.b16 %v1047
        %v1081 = vunpack.c.l.b16 %v1048
        %v1082 = vunpack.c.l.b16 %v1049
        %v1083 = vunpack.c.l.b16 %v1050
        %v1084 = vunpack.c.l.b16 %v1051
        %v1085 = vunpack.c.l.b16 %v1052
        %v1086 = vunpack.c.l.b16 %v1053
        %v1087 = vunpack.c.l.b16 %v1054
        %v1088 = vunpack.c.l.b16 %v1055
        %v1089 = vpack.c.b16 %v1074, %v1073
        %v1090 = vpack.c.b16 %v1076, %v1075
        %v1091 = vpack.c.b16 %v1078, %v1077
        %v1092 = vpack.c.b16 %v1080, %v1079
        %v1093 = vpack.c.b16 %v1082, %v1081
        %v1094 = vpack.c.b16 %v1084, %v1083
        %v1095 = vpack.c.b16 %v1086, %v1085
        %v1096 = vpack.c.b16 %v1088, %v1087
        %vm1097 = vcmask 64512
        %v1099 = vsel %vm1097, %v1089, 0
        %v1102 = vsel %vm1097, %v1090, 0
        %v1105 = vsel %vm1097, %v1091, 0
        %v1108 = vsel %vm1097, %v1092, 0
        %v1111 = vsel %vm1097, %v1093, 0
        %v1114 = vsel %vm1097, %v1094, 0
        %v1117 = vsel %vm1097, %v1095, 0
        %v1120 = vsel %vm1097, %v1096, 0
        %vm1122 = vcmask 1043456
        %v1124 = vsel %vm1122, %v1056, 0
        %1126 = vmatpush.bf16.msra.mxu0 0
        %1127 = vmatpush.bf16.msra.mxu0 0
        %1128 = vmatpush.bf16.msra.mxu0 0
        %1129 = vmatpush.bf16.msra.mxu0 0
        %1130 = vmatpush.bf16.msra.mxu0 0
        %1131 = vmatpush.bf16.msra.mxu0 0
        %1132 = vmatpush.bf16.msra.mxu0 0
        %1133 = vmatpush.bf16.msra.mxu0 %v1124
        %1134 = vmatmul.bf16.gmra.mxu0 %v1099
        %v1135 = vpop.f32.mrf.mxu0
        %v1136 = vadd.f32 0.0, %v1135
        %v1137 = vpop.f32.mrf.mxu0
        %v1138 = vadd.f32 0.0, %v1137
        %1139 = vmatmul.bf16.gmra.mxu0 %v1102
        %v1140 = vpop.f32.mrf.mxu0
        %v1141 = vadd.f32 0.0, %v1140
        %v1142 = vpop.f32.mrf.mxu0
        %v1143 = vadd.f32 0.0, %v1142
        %1144 = vmatmul.bf16.gmra.mxu0 %v1105
        %v1145 = vpop.f32.mrf.mxu0
        %v1146 = vadd.f32 0.0, %v1145
        %v1147 = vpop.f32.mrf.mxu0
        %v1148 = vadd.f32 0.0, %v1147
        %1149 = vmatmul.bf16.gmra.mxu0 %v1108
        %v1150 = vpop.f32.mrf.mxu0
        %v1151 = vadd.f32 0.0, %v1150
        %v1152 = vpop.f32.mrf.mxu0
        %v1153 = vadd.f32 0.0, %v1152
        %1154 = vmatmul.bf16.gmra.mxu0 %v1111
        %v1155 = vpop.f32.mrf.mxu0
        %v1156 = vadd.f32 0.0, %v1155
        %v1157 = vpop.f32.mrf.mxu0
        %v1158 = vadd.f32 0.0, %v1157
        %1159 = vmatmul.bf16.gmra.mxu0 %v1114
        %v1160 = vpop.f32.mrf.mxu0
        %v1161 = vadd.f32 0.0, %v1160
        %v1162 = vpop.f32.mrf.mxu0
        %v1163 = vadd.f32 0.0, %v1162
        %1164 = vmatmul.bf16.gmra.mxu0 %v1117
        %v1165 = vpop.f32.mrf.mxu0
        %v1166 = vadd.f32 0.0, %v1165
        %v1167 = vpop.f32.mrf.mxu0
        %v1168 = vadd.f32 0.0, %v1167
        %1169 = vmatmul.bf16.gmra.mxu0 %v1120
        %v1170 = vpop.f32.mrf.mxu0
        %v1171 = vadd.f32 0.0, %v1170
        %v1172 = vpop.f32.mrf.mxu0
        %v1173 = vadd.f32 0.0, %v1172
        %1174 = vdwg.mxu0
        %v1175 = vld [vmem:[%s3] sm:$0xf]
        %v1176 = vld [vmem:[%s3 + $0x4] sm:$0xf]
        %v1177 = vld [vmem:[%s3 + $0x8] sm:$0xf]
        %v1178 = vld [vmem:[%s3 + $0xc] sm:$0xf]
        %v1179 = vld [vmem:[%s3 + $0x10] sm:$0xf]
        %v1180 = vld [vmem:[%s3 + $0x14] sm:$0xf]
        %v1181 = vld [vmem:[%s3 + $0x18] sm:$0xf]
        %v1182 = vld [vmem:[%s3 + $0x1c] sm:$0xf]
        %v1183 = vld [vmem:[%s3 + $0x20] sm:$0xf]
        %v1184 = vld [vmem:[%s3 + $0x24] sm:$0xf]
        %v1185 = vld [vmem:[%s3 + $0x28] sm:$0xf]
        %v1186 = vld [vmem:[%s3 + $0x2c] sm:$0xf]
        %v1187 = vld [vmem:[%s3 + $0x30] sm:$0xf]
        %v1188 = vld [vmem:[%s3 + $0x34] sm:$0xf]
        %v1189 = vld [vmem:[%s3 + $0x38] sm:$0xf]
        %v1190 = vld [vmem:[%s3 + $0x3c] sm:$0xf]
        %v1191 = vpack.c.bf16 %v1025, %v1024
        %v1192 = vpack.c.bf16 %v1027, %v1026
        %v1193 = vpack.c.bf16 %v1029, %v1028
        %v1194 = vpack.c.bf16 %v1031, %v1030
        %v1195 = vpack.c.bf16 %v1033, %v1032
        %v1196 = vpack.c.bf16 %v1035, %v1034
        %v1197 = vpack.c.bf16 %v1037, %v1036
        %v1198 = vpack.c.bf16 %v1039, %v1038
        %v1215 = vunpack.c.l.b16 %v1175
        %v1216 = vunpack.c.l.b16 %v1176
        %v1217 = vunpack.c.l.b16 %v1177
        %v1218 = vunpack.c.l.b16 %v1178
        %v1219 = vunpack.c.l.b16 %v1179
        %v1220 = vunpack.c.l.b16 %v1180
        %v1221 = vunpack.c.l.b16 %v1181
        %v1222 = vunpack.c.l.b16 %v1182
        %v1223 = vunpack.c.l.b16 %v1183
        %v1224 = vunpack.c.l.b16 %v1184
        %v1225 = vunpack.c.l.b16 %v1185
        %v1226 = vunpack.c.l.b16 %v1186
        %v1227 = vunpack.c.l.b16 %v1187
        %v1228 = vunpack.c.l.b16 %v1188
        %v1229 = vunpack.c.l.b16 %v1189
        %v1230 = vunpack.c.l.b16 %v1190
        %v1231 = vpack.c.b16 %v1216, %v1215
        %v1232 = vpack.c.b16 %v1218, %v1217
        %v1233 = vpack.c.b16 %v1220, %v1219
        %v1234 = vpack.c.b16 %v1222, %v1221
        %v1235 = vpack.c.b16 %v1224, %v1223
        %v1236 = vpack.c.b16 %v1226, %v1225
        %v1237 = vpack.c.b16 %v1228, %v1227
        %v1238 = vpack.c.b16 %v1230, %v1229
        %1247 = vmatpush.bf16.msra.mxu0 %v1198
        %1248 = vmatpush.bf16.msra.mxu0 %v1197
        %1249 = vmatpush.bf16.msra.mxu0 %v1196
        %1250 = vmatpush.bf16.msra.mxu0 %v1195
        %1251 = vmatpush.bf16.msra.mxu0 %v1194
        %1252 = vmatpush.bf16.msra.mxu0 %v1193
        %1253 = vmatpush.bf16.msra.mxu0 %v1192
        %1254 = vmatpush.bf16.msra.mxu0 %v1191
        %1255 = vmatmul.bf16.gmra.mxu0 %v1231
        %v1256 = vpop.f32.mrf.mxu0
        %v1257 = vadd.f32 %v1136, %v1256
        %v1258 = vpop.f32.mrf.mxu0
        %v1259 = vadd.f32 %v1138, %v1258
        %1260 = vmatmul.bf16.gmra.mxu0 %v1232
        %v1261 = vpop.f32.mrf.mxu0
        %v1262 = vadd.f32 %v1141, %v1261
        %v1263 = vpop.f32.mrf.mxu0
        %v1264 = vadd.f32 %v1143, %v1263
        %1265 = vmatmul.bf16.gmra.mxu0 %v1233
        %v1266 = vpop.f32.mrf.mxu0
        %v1267 = vadd.f32 %v1146, %v1266
        %v1268 = vpop.f32.mrf.mxu0
        %v1269 = vadd.f32 %v1148, %v1268
        %1270 = vmatmul.bf16.gmra.mxu0 %v1234
        %v1271 = vpop.f32.mrf.mxu0
        %v1272 = vadd.f32 %v1151, %v1271
        %v1273 = vpop.f32.mrf.mxu0
        %v1274 = vadd.f32 %v1153, %v1273
        %1275 = vmatmul.bf16.gmra.mxu0 %v1235
        %v1276 = vpop.f32.mrf.mxu0
        %v1277 = vadd.f32 %v1156, %v1276
        %v1278 = vpop.f32.mrf.mxu0
        %v1279 = vadd.f32 %v1158, %v1278
        %1280 = vmatmul.bf16.gmra.mxu0 %v1236
        %v1281 = vpop.f32.mrf.mxu0
        %v1282 = vadd.f32 %v1161, %v1281
        %v1283 = vpop.f32.mrf.mxu0
        %v1284 = vadd.f32 %v1163, %v1283
        %1285 = vmatmul.bf16.gmra.mxu0 %v1237
        %v1286 = vpop.f32.mrf.mxu0
        %v1287 = vadd.f32 %v1166, %v1286
        %v1288 = vpop.f32.mrf.mxu0
        %v1289 = vadd.f32 %v1168, %v1288
        %1290 = vmatmul.bf16.gmra.mxu0 %v1238
        %v1291 = vpop.f32.mrf.mxu0
        %v1292 = vadd.f32 %v1171, %v1291
        %v1293 = vpop.f32.mrf.mxu0
        %v1294 = vadd.f32 %v1173, %v1293
        %1295 = vdwg.mxu0
        %v1296 = vmax.f32 %v1257, 0.0
        %v1297 = vmax.f32 %v1259, 0.0
        %v1298 = vmax.f32 %v1262, 0.0
        %v1299 = vmax.f32 %v1264, 0.0
        %v1300 = vmax.f32 %v1267, 0.0
        %v1301 = vmax.f32 %v1269, 0.0
        %v1302 = vmax.f32 %v1272, 0.0
        %v1303 = vmax.f32 %v1274, 0.0
        %v1304 = vmax.f32 %v1277, 0.0
        %v1305 = vmax.f32 %v1279, 0.0
        %v1306 = vmax.f32 %v1282, 0.0
        %v1307 = vmax.f32 %v1284, 0.0
        %v1308 = vmax.f32 %v1287, 0.0
        %v1309 = vmax.f32 %v1289, 0.0
        %v1310 = vmax.f32 %v1292, 0.0
        %v1311 = vmax.f32 %v1294, 0.0
        %v1312 = vld [vmem:[%s4] sm:$0xf]
        %v1313 = vld [vmem:[%s4 + $0x4] sm:$0xf]
        %v1314 = vld [vmem:[%s4 + $0x8] sm:$0xf]
        %v1315 = vld [vmem:[%s4 + $0xc] sm:$0xf]
        %v1316 = vld [vmem:[%s4 + $0x10] sm:$0xf]
        %v1317 = vld [vmem:[%s4 + $0x14] sm:$0xf]
        %v1318 = vld [vmem:[%s4 + $0x18] sm:$0xf]
        %v1319 = vld [vmem:[%s4 + $0x1c] sm:$0xf]
        %v1320 = vld [vmem:[%s4 + $0x20] sm:$0xf]
        %v1321 = vld [vmem:[%s4 + $0x24] sm:$0xf]
        %v1322 = vld [vmem:[%s4 + $0x28] sm:$0xf]
        %v1323 = vld [vmem:[%s4 + $0x2c] sm:$0xf]
        %v1324 = vld [vmem:[%s4 + $0x30] sm:$0xf]
        %v1325 = vld [vmem:[%s4 + $0x34] sm:$0xf]
        %v1326 = vld [vmem:[%s4 + $0x38] sm:$0xf]
        %v1327 = vld [vmem:[%s4 + $0x3c] sm:$0xf]
        %v1328 = vpack.c.bf16 %v1297, %v1296
        %v1329 = vpack.c.bf16 %v1299, %v1298
        %v1330 = vpack.c.bf16 %v1301, %v1300
        %v1331 = vpack.c.bf16 %v1303, %v1302
        %v1332 = vpack.c.bf16 %v1305, %v1304
        %v1333 = vpack.c.bf16 %v1307, %v1306
        %v1334 = vpack.c.bf16 %v1309, %v1308
        %v1335 = vpack.c.bf16 %v1311, %v1310
        %v1352 = vunpack.c.l.b16 %v1312
        %v1353 = vunpack.c.l.b16 %v1313
        %v1354 = vunpack.c.l.b16 %v1314
        %v1355 = vunpack.c.l.b16 %v1315
        %v1356 = vunpack.c.l.b16 %v1316
        %v1357 = vunpack.c.l.b16 %v1317
        %v1358 = vunpack.c.l.b16 %v1318
        %v1359 = vunpack.c.l.b16 %v1319
        %v1360 = vunpack.c.l.b16 %v1320
        %v1361 = vunpack.c.l.b16 %v1321
        %v1362 = vunpack.c.l.b16 %v1322
        %v1363 = vunpack.c.l.b16 %v1323
        %v1364 = vunpack.c.l.b16 %v1324
        %v1365 = vunpack.c.l.b16 %v1325
        %v1366 = vunpack.c.l.b16 %v1326
        %v1367 = vunpack.c.l.b16 %v1327
        %v1368 = vpack.c.b16 %v1353, %v1352
        %v1369 = vpack.c.b16 %v1355, %v1354
        %v1370 = vpack.c.b16 %v1357, %v1356
        %v1371 = vpack.c.b16 %v1359, %v1358
        %v1372 = vpack.c.b16 %v1361, %v1360
        %v1373 = vpack.c.b16 %v1363, %v1362
        %v1374 = vpack.c.b16 %v1365, %v1364
        %v1375 = vpack.c.b16 %v1367, %v1366
        %1384 = vmatpush.bf16.msra.mxu0 %v1335
        %1385 = vmatpush.bf16.msra.mxu0 %v1334
        %1386 = vmatpush.bf16.msra.mxu0 %v1333
        %1387 = vmatpush.bf16.msra.mxu0 %v1332
        %1388 = vmatpush.bf16.msra.mxu0 %v1331
        %1389 = vmatpush.bf16.msra.mxu0 %v1330
        %1390 = vmatpush.bf16.msra.mxu0 %v1329
        %1391 = vmatpush.bf16.msra.mxu0 %v1328
        %1392 = vmatmul.bf16.gmra.mxu0 %v1368
        %v1393 = vpop.f32.mrf.mxu0
        %v1394 = vadd.f32 0.0, %v1393
        %v1395 = vpop.f32.mrf.mxu0
        %v1396 = vadd.f32 0.0, %v1395
        %1397 = vmatmul.bf16.gmra.mxu0 %v1369
        %v1398 = vpop.f32.mrf.mxu0
        %v1399 = vadd.f32 0.0, %v1398
        %v1400 = vpop.f32.mrf.mxu0
        %v1401 = vadd.f32 0.0, %v1400
        %1402 = vmatmul.bf16.gmra.mxu0 %v1370
        %v1403 = vpop.f32.mrf.mxu0
        %v1404 = vadd.f32 0.0, %v1403
        %v1405 = vpop.f32.mrf.mxu0
        %v1406 = vadd.f32 0.0, %v1405
        %1407 = vmatmul.bf16.gmra.mxu0 %v1371
        %v1408 = vpop.f32.mrf.mxu0
        %v1409 = vadd.f32 0.0, %v1408
        %v1410 = vpop.f32.mrf.mxu0
        %v1411 = vadd.f32 0.0, %v1410
        %1412 = vmatmul.bf16.gmra.mxu0 %v1372
        %v1413 = vpop.f32.mrf.mxu0
        %v1414 = vadd.f32 0.0, %v1413
        %v1415 = vpop.f32.mrf.mxu0
        %v1416 = vadd.f32 0.0, %v1415
        %1417 = vmatmul.bf16.gmra.mxu0 %v1373
        %v1418 = vpop.f32.mrf.mxu0
        %v1419 = vadd.f32 0.0, %v1418
        %v1420 = vpop.f32.mrf.mxu0
        %v1421 = vadd.f32 0.0, %v1420
        %1422 = vmatmul.bf16.gmra.mxu0 %v1374
        %v1423 = vpop.f32.mrf.mxu0
        %v1424 = vadd.f32 0.0, %v1423
        %v1425 = vpop.f32.mrf.mxu0
        %v1426 = vadd.f32 0.0, %v1425
        %1427 = vmatmul.bf16.gmra.mxu0 %v1375
        %v1428 = vpop.f32.mrf.mxu0
        %v1429 = vadd.f32 0.0, %v1428
        %v1430 = vpop.f32.mrf.mxu0
        %v1431 = vadd.f32 0.0, %v1430
        %1432 = vdwg.mxu0
        %s1433 = sld [smem:[#allocation2 + %s30]]
        %s1434 = sadd.f32 %s1433, 1.0
        %v1435 = vstv %s1434
        %v1436 = vmul.f32 %v1435, %v1024
        %v1437 = vmul.f32 %v1435, %v1025
        %v1438 = vmul.f32 %v1435, %v1026
        %v1439 = vmul.f32 %v1435, %v1027
        %v1440 = vmul.f32 %v1435, %v1028
        %v1441 = vmul.f32 %v1435, %v1029
        %v1442 = vmul.f32 %v1435, %v1030
        %v1443 = vmul.f32 %v1435, %v1031
        %v1444 = vmul.f32 %v1435, %v1032
        %v1445 = vmul.f32 %v1435, %v1033
        %v1446 = vmul.f32 %v1435, %v1034
        %v1447 = vmul.f32 %v1435, %v1035
        %v1448 = vmul.f32 %v1435, %v1036
        %v1449 = vmul.f32 %v1435, %v1037
        %v1450 = vmul.f32 %v1435, %v1038
        %v1451 = vmul.f32 %v1435, %v1039
        %v1452 = vadd.f32 %v1436, %v1394
        %v1453 = vadd.f32 %v1437, %v1396
        %v1454 = vadd.f32 %v1438, %v1399
        %v1455 = vadd.f32 %v1439, %v1401
        %v1456 = vadd.f32 %v1440, %v1404
        %v1457 = vadd.f32 %v1441, %v1406
        %v1458 = vadd.f32 %v1442, %v1409
        %v1459 = vadd.f32 %v1443, %v1411
        %v1460 = vadd.f32 %v1444, %v1414
        %v1461 = vadd.f32 %v1445, %v1416
        %v1462 = vadd.f32 %v1446, %v1419
        %v1463 = vadd.f32 %v1447, %v1421
        %v1464 = vadd.f32 %v1448, %v1424
        %v1465 = vadd.f32 %v1449, %v1426
        %v1466 = vadd.f32 %v1450, %v1429
        %v1467 = vadd.f32 %v1451, %v1431
        %v1468 = vpack.c.bf16 %v1453, %v1452
        %v1469 = vpack.c.bf16 %v1455, %v1454
        %v1470 = vpack.c.bf16 %v1457, %v1456
        %v1471 = vpack.c.bf16 %v1459, %v1458
        %v1472 = vpack.c.bf16 %v1461, %v1460
        %v1473 = vpack.c.bf16 %v1463, %v1462
        %v1474 = vpack.c.bf16 %v1465, %v1464
        %v1475 = vpack.c.bf16 %v1467, %v1466
        %v1476 = vld [vmem:[%s642] sm:$0xf]
        %v1477 = vld [vmem:[%s642 + $0x4] sm:$0xf]
        %v1478 = vld [vmem:[%s642 + $0x8] sm:$0xf]
        %v1479 = vld [vmem:[%s642 + $0xc] sm:$0xf]
        %v1480 = vld [vmem:[%s642 + $0x10] sm:$0xf]
        %v1481 = vld [vmem:[%s642 + $0x14] sm:$0xf]
        %v1482 = vld [vmem:[%s642 + $0x18] sm:$0xf]
        %v1483 = vld [vmem:[%s642 + $0x1c] sm:$0xf]
        %v1484 = vld [vmem:[%s642 + $0x20] sm:$0xf]
        %v1485 = vld [vmem:[%s642 + $0x24] sm:$0xf]
        %v1486 = vld [vmem:[%s642 + $0x28] sm:$0xf]
        %v1487 = vld [vmem:[%s642 + $0x2c] sm:$0xf]
        %v1488 = vld [vmem:[%s642 + $0x30] sm:$0xf]
        %v1489 = vld [vmem:[%s642 + $0x34] sm:$0xf]
        %v1490 = vld [vmem:[%s642 + $0x38] sm:$0xf]
        %v1491 = vld [vmem:[%s642 + $0x3c] sm:$0xf]
        %v1492 = vld [vmem:[%s645] sm:$0x1]
        %v1494 = vperm.slane %v1492, 0
        %v1512 = vunpack.c.l.b16 %v1476
        %v1513 = vunpack.c.l.b16 %v1477
        %v1514 = vunpack.c.l.b16 %v1478
        %v1515 = vunpack.c.l.b16 %v1479
        %v1516 = vunpack.c.l.b16 %v1480
        %v1517 = vunpack.c.l.b16 %v1481
        %v1518 = vunpack.c.l.b16 %v1482
        %v1519 = vunpack.c.l.b16 %v1483
        %v1520 = vunpack.c.l.b16 %v1484
        %v1521 = vunpack.c.l.b16 %v1485
        %v1522 = vunpack.c.l.b16 %v1486
        %v1523 = vunpack.c.l.b16 %v1487
        %v1524 = vunpack.c.l.b16 %v1488
        %v1525 = vunpack.c.l.b16 %v1489
        %v1526 = vunpack.c.l.b16 %v1490
        %v1527 = vunpack.c.l.b16 %v1491
        %v1528 = vpack.c.b16 %v1513, %v1512
        %v1529 = vpack.c.b16 %v1515, %v1514
        %v1530 = vpack.c.b16 %v1517, %v1516
        %v1531 = vpack.c.b16 %v1519, %v1518
        %v1532 = vpack.c.b16 %v1521, %v1520
        %v1533 = vpack.c.b16 %v1523, %v1522
        %v1534 = vpack.c.b16 %v1525, %v1524
        %v1535 = vpack.c.b16 %v1527, %v1526
        %1544 = vmatpush.bf16.msra.mxu0 %v1535
        %1545 = vmatpush.bf16.msra.mxu0 %v1534
        %1546 = vmatpush.bf16.msra.mxu0 %v1533
        %1547 = vmatpush.bf16.msra.mxu0 %v1532
        %1548 = vmatpush.bf16.msra.mxu0 %v1531
        %1549 = vmatpush.bf16.msra.mxu0 %v1530
        %1550 = vmatpush.bf16.msra.mxu0 %v1529
        %1551 = vmatpush.bf16.msra.mxu0 %v1528
        %1552 = vmatmul.bf16.gmra.mxu0 %v1468
        %v1553 = vpop.f32.mrf.mxu0
        %v1554 = vadd.f32 %v1494, %v1553
        %v1555 = vpop.f32.mrf.mxu0
        %v1556 = vadd.f32 %v1494, %v1555
        %1557 = vmatmul.bf16.gmra.mxu0 %v1469
        %v1558 = vpop.f32.mrf.mxu0
        %v1559 = vadd.f32 %v1494, %v1558
        %v1560 = vpop.f32.mrf.mxu0
        %v1561 = vadd.f32 %v1494, %v1560
        %1562 = vmatmul.bf16.gmra.mxu0 %v1470
        %v1563 = vpop.f32.mrf.mxu0
        %v1564 = vadd.f32 %v1494, %v1563
        %v1565 = vpop.f32.mrf.mxu0
        %v1566 = vadd.f32 %v1494, %v1565
        %1567 = vmatmul.bf16.gmra.mxu0 %v1471
        %v1568 = vpop.f32.mrf.mxu0
        %v1569 = vadd.f32 %v1494, %v1568
        %v1570 = vpop.f32.mrf.mxu0
        %v1571 = vadd.f32 %v1494, %v1570
        %1572 = vmatmul.bf16.gmra.mxu0 %v1472
        %v1573 = vpop.f32.mrf.mxu0
        %v1574 = vadd.f32 %v1494, %v1573
        %v1575 = vpop.f32.mrf.mxu0
        %v1576 = vadd.f32 %v1494, %v1575
        %1577 = vmatmul.bf16.gmra.mxu0 %v1473
        %v1578 = vpop.f32.mrf.mxu0
        %v1579 = vadd.f32 %v1494, %v1578
        %v1580 = vpop.f32.mrf.mxu0
        %v1581 = vadd.f32 %v1494, %v1580
        %1582 = vmatmul.bf16.gmra.mxu0 %v1474
        %v1583 = vpop.f32.mrf.mxu0
        %v1584 = vadd.f32 %v1494, %v1583
        %v1585 = vpop.f32.mrf.mxu0
        %v1586 = vadd.f32 %v1494, %v1585
        %1587 = vmatmul.bf16.gmra.mxu0 %v1475
        %v1588 = vpop.f32.mrf.mxu0
        %v1589 = vadd.f32 %v1494, %v1588
        %v1590 = vpop.f32.mrf.mxu0
        %v1591 = vadd.f32 %v1494, %v1590
        %1592 = vdwg.mxu0
        %v1593 = vmax.f32 %v1554, 0.0
        %v1594 = vmax.f32 %v1556, 0.0
        %v1595 = vmax.f32 %v1559, 0.0
        %v1596 = vmax.f32 %v1561, 0.0
        %v1597 = vmax.f32 %v1564, 0.0
        %v1598 = vmax.f32 %v1566, 0.0
        %v1599 = vmax.f32 %v1569, 0.0
        %v1600 = vmax.f32 %v1571, 0.0
        %v1601 = vmax.f32 %v1574, 0.0
        %v1602 = vmax.f32 %v1576, 0.0
        %v1603 = vmax.f32 %v1579, 0.0
        %v1604 = vmax.f32 %v1581, 0.0
        %v1605 = vmax.f32 %v1584, 0.0
        %v1606 = vmax.f32 %v1586, 0.0
        %v1607 = vmax.f32 %v1589, 0.0
        %v1608 = vmax.f32 %v1591, 0.0
        %v1609 = vpack.c.bf16 %v1594, %v1593
        %v1610 = vpack.c.bf16 %v1596, %v1595
        %v1611 = vpack.c.bf16 %v1598, %v1597
        %v1612 = vpack.c.bf16 %v1600, %v1599
        %v1613 = vpack.c.bf16 %v1602, %v1601
        %v1614 = vpack.c.bf16 %v1604, %v1603
        %v1615 = vpack.c.bf16 %v1606, %v1605
        %v1616 = vpack.c.bf16 %v1608, %v1607
        %v1617 = vld [vmem:[%s543] sm:$0xf]
        %v1618 = vld [vmem:[%s543 + $0x4] sm:$0xf]
        %v1619 = vld [vmem:[%s543 + $0x8] sm:$0xf]
        %v1620 = vld [vmem:[%s543 + $0xc] sm:$0xf]
        %v1621 = vld [vmem:[%s543 + $0x10] sm:$0xf]
        %v1622 = vld [vmem:[%s543 + $0x14] sm:$0xf]
        %v1623 = vld [vmem:[%s543 + $0x18] sm:$0xf]
        %v1624 = vld [vmem:[%s543 + $0x1c] sm:$0xf]
        %v1625 = vld [vmem:[%s543 + $0x20] sm:$0xf]
        %v1626 = vld [vmem:[%s543 + $0x24] sm:$0xf]
        %v1627 = vld [vmem:[%s543 + $0x28] sm:$0xf]
        %v1628 = vld [vmem:[%s543 + $0x2c] sm:$0xf]
        %v1629 = vld [vmem:[%s543 + $0x30] sm:$0xf]
        %v1630 = vld [vmem:[%s543 + $0x34] sm:$0xf]
        %v1631 = vld [vmem:[%s543 + $0x38] sm:$0xf]
        %v1632 = vld [vmem:[%s543 + $0x3c] sm:$0xf]
        %v1633 = vld [vmem:[%s648] sm:$0x1]
        %v1635 = vperm.slane %v1633, 0
        %v1653 = vunpack.c.l.b16 %v1617
        %v1654 = vunpack.c.l.b16 %v1618
        %v1655 = vunpack.c.l.b16 %v1619
        %v1656 = vunpack.c.l.b16 %v1620
        %v1657 = vunpack.c.l.b16 %v1621
        %v1658 = vunpack.c.l.b16 %v1622
        %v1659 = vunpack.c.l.b16 %v1623
        %v1660 = vunpack.c.l.b16 %v1624
        %v1661 = vunpack.c.l.b16 %v1625
        %v1662 = vunpack.c.l.b16 %v1626
        %v1663 = vunpack.c.l.b16 %v1627
        %v1664 = vunpack.c.l.b16 %v1628
        %v1665 = vunpack.c.l.b16 %v1629
        %v1666 = vunpack.c.l.b16 %v1630
        %v1667 = vunpack.c.l.b16 %v1631
        %v1668 = vunpack.c.l.b16 %v1632
        %v1669 = vpack.c.b16 %v1654, %v1653
        %v1670 = vpack.c.b16 %v1656, %v1655
        %v1671 = vpack.c.b16 %v1658, %v1657
        %v1672 = vpack.c.b16 %v1660, %v1659
        %v1673 = vpack.c.b16 %v1662, %v1661
        %v1674 = vpack.c.b16 %v1664, %v1663
        %v1675 = vpack.c.b16 %v1666, %v1665
        %v1676 = vpack.c.b16 %v1668, %v1667
        %1685 = vmatpush.bf16.msra.mxu0 %v1676
        %1686 = vmatpush.bf16.msra.mxu0 %v1675
        %1687 = vmatpush.bf16.msra.mxu0 %v1674
        %1688 = vmatpush.bf16.msra.mxu0 %v1673
        %1689 = vmatpush.bf16.msra.mxu0 %v1672
        %1690 = vmatpush.bf16.msra.mxu0 %v1671
        %1691 = vmatpush.bf16.msra.mxu0 %v1670
        %1692 = vmatpush.bf16.msra.mxu0 %v1669
        %1693 = vmatmul.bf16.gmra.mxu0 %v1609
        %v1694 = vpop.f32.mrf.mxu0
        %v1695 = vadd.f32 %v1635, %v1694
        %v1696 = vpop.f32.mrf.mxu0
        %v1697 = vadd.f32 %v1635, %v1696
        %1698 = vmatmul.bf16.gmra.mxu0 %v1610
        %v1699 = vpop.f32.mrf.mxu0
        %v1700 = vadd.f32 %v1635, %v1699
        %v1701 = vpop.f32.mrf.mxu0
        %v1702 = vadd.f32 %v1635, %v1701
        %1703 = vmatmul.bf16.gmra.mxu0 %v1611
        %v1704 = vpop.f32.mrf.mxu0
        %v1705 = vadd.f32 %v1635, %v1704
        %v1706 = vpop.f32.mrf.mxu0
        %v1707 = vadd.f32 %v1635, %v1706
        %1708 = vmatmul.bf16.gmra.mxu0 %v1612
        %v1709 = vpop.f32.mrf.mxu0
        %v1710 = vadd.f32 %v1635, %v1709
        %v1711 = vpop.f32.mrf.mxu0
        %v1712 = vadd.f32 %v1635, %v1711
        %1713 = vmatmul.bf16.gmra.mxu0 %v1613
        %v1714 = vpop.f32.mrf.mxu0
        %v1715 = vadd.f32 %v1635, %v1714
        %v1716 = vpop.f32.mrf.mxu0
        %v1717 = vadd.f32 %v1635, %v1716
        %1718 = vmatmul.bf16.gmra.mxu0 %v1614
        %v1719 = vpop.f32.mrf.mxu0
        %v1720 = vadd.f32 %v1635, %v1719
        %v1721 = vpop.f32.mrf.mxu0
        %v1722 = vadd.f32 %v1635, %v1721
        %1723 = vmatmul.bf16.gmra.mxu0 %v1615
        %v1724 = vpop.f32.mrf.mxu0
        %v1725 = vadd.f32 %v1635, %v1724
        %v1726 = vpop.f32.mrf.mxu0
        %v1727 = vadd.f32 %v1635, %v1726
        %1728 = vmatmul.bf16.gmra.mxu0 %v1616
        %v1729 = vpop.f32.mrf.mxu0
        %v1730 = vadd.f32 %v1635, %v1729
        %v1731 = vpop.f32.mrf.mxu0
        %v1732 = vadd.f32 %v1635, %v1731
        %1733 = vdwg.mxu0
        %1734 = vst [vmem:[%s15] sm:$0xff] %v1695
        %1735 = vst [vmem:[%s15 + $0x8] sm:$0xff] %v1697
        %1736 = vst [vmem:[%s15 + $0x10] sm:$0xff] %v1700
        %1737 = vst [vmem:[%s15 + $0x18] sm:$0xff] %v1702
        %1738 = vst [vmem:[%s15 + $0x20] sm:$0xff] %v1705
        %1739 = vst [vmem:[%s15 + $0x28] sm:$0xff] %v1707
        %1740 = vst [vmem:[%s15 + $0x30] sm:$0xff] %v1710
        %1741 = vst [vmem:[%s15 + $0x38] sm:$0xff] %v1712
        %1742 = vst [vmem:[%s15 + $0x40] sm:$0xff] %v1715
        %1743 = vst [vmem:[%s15 + $0x48] sm:$0xff] %v1717
        %1744 = vst [vmem:[%s15 + $0x50] sm:$0xff] %v1720
        %1745 = vst [vmem:[%s15 + $0x58] sm:$0xff] %v1722
        %1746 = vst [vmem:[%s15 + $0x60] sm:$0xff] %v1725
        %1747 = vst [vmem:[%s15 + $0x68] sm:$0xff] %v1727
        %1748 = vst [vmem:[%s15 + $0x70] sm:$0xff] %v1730
        %1749 = vst [vmem:[%s15 + $0x78] sm:$0xff] %v1732
        // Predicated region
        $region93: #{gine_forward_pallas.1} parent=79 // pred_check
          %p1750 = pneg %p403
        $region94: #{gine_forward_pallas.1} parent=79 // pred_check_branch
          %1752 = sbr.rel (%p1750) target = $region96
        $region95: #{gine_forward_pallas.1} parent=79 // pred_region
          _
        $region96: #{gine_forward_pallas.1} parent=79 // pred_fallthru
          _
        // Predicated region
        $region97: #{gine_forward_pallas.1} parent=79 // pred_check
          %p1753 = pneg %p403
        $region98: #{gine_forward_pallas.1} parent=79 // pred_check_branch
          %1755 = sbr.rel (%p1753) target = $region100
        $region99: #{gine_forward_pallas.1} parent=79 // pred_region
          _
        $region100: #{gine_forward_pallas.1} parent=79 // pred_fallthru
          _
      $region80: #{gine_forward_pallas.1} parent=5 // pred_fallthru
        _
      %p1756 = scmp.le.s32.totalorder 2, %s25
      // Predicated region
      $region101: #{gine_forward_pallas.1} parent=5 // pred_check
        %p1757 = pneg %p1756
      $region102: #{gine_forward_pallas.1} parent=5 // pred_check_branch
        %1759 = sbr.rel (%p1757) target = $region104
      $region103: #{gine_forward_pallas.1} parent=5 // pred_region
        %s1760 = ssub.s32 %s25, 2
      $region104: #{gine_forward_pallas.1} parent=5 // pred_fallthru
        _
    $region6: #{gine_forward_pallas.1} parent=1 // loop_footer
      %s29 = sadd.s32 1, %s25
    $region7: #{gine_forward_pallas.1} parent=1 // loop_footer_branch
      %24 = sbr.rel target = $region3
    $region8: #{gine_forward_pallas.1} parent=1 // loop_exit
      _
    %1761 = vsyncpa [#allocation3], 1
    %s1762 = scalar_lea.sflag [#allocation3], 1
    %1763 = vsyncpa %s1762, 1
    %1764 = vsyncpa [#allocation4], 1
    %s1765 = scalar_lea.sflag [#allocation4], 1
    %1766 = vsyncpa %s1765, 1

</llo_original>
